<compile_context>
chip_gen: v7x
topology: tpu7x:2x2x1
jax: 0.10.0
libtpu: 0.0.40
codegen_flags: <defaults>
</compile_context>

<pallas_src>
import jax
import jax.numpy as jnp
from jax import lax
from jax.experimental import pallas as pl
from jax.experimental.pallas import tpu as pltpu  # noqa: F401  (no TPU-specific params needed)

# ---------------- synthetic small-BERT config ----------------
B, S = 2, 8          # batch, sequence length
T = B * S            # total tokens processed as one slab
H = 32               # hidden size
NH, DH = 2, 16       # attention heads, head dim
FF = 64              # intermediate (FFN) size
NLAYERS = 2
VOCAB = 100
MAXPOS = 16
NUM_CLASSES = 2
EPS = 1e-12          # BERT layernorm eps
LANE = 128           # lane-dense padding for the classifier output

# packed weight-slab layout (per layer):  rows x cols = 64 x 224, bf16
#   Wqkv  : [0:H , 0      : 3H      ]   (Q-scale folded in)
#   Wo    : [0:H , 3H     : 4H      ]
#   W1    : [0:H , 4H     : 4H+FF   ]
#   W2    : [0:FF, 4H+FF  : 4H+FF+H ]
WROWS = max(H, FF)
WCOLS = 4 * H + FF + H


def _layer_norm(x, g, b):
    # f32 statistics over the hidden (lane) axis
    mu = jnp.mean(x, axis=-1, keepdims=True)
    var = jnp.mean((x - mu) ** 2, axis=-1, keepdims=True)
    return (x - mu) * lax.rsqrt(var + EPS) * g + b


# ---------------- fused forward kernel (single grid step) ----------------
def fused_bert_kernel(emb_ref, mask_ref, w_ref, b_ref, misc_ref, clsw_ref, out_ref):
    # emb_ref : (T, H)  f32   flattened word+pos+type embeddings
    # mask_ref: (T, T)  f32   additive bias (block-diagonal batch isolation + key padding)
    # w_ref   : (NLAYERS, WROWS, WCOLS) bf16   packed matmul weights
    # b_ref   : (NLAYERS, 8, LANE)      f32    packed biases / LN params
    # misc_ref: (8, LANE) f32   row0 emb_ln_g, row1 emb_ln_b, row2 cls_b
    # clsw_ref: (H, LANE) bf16  classifier weight padded to 128 lanes
    # out_ref : (T, LANE) f32   logits for every token (CLS rows sliced outside)

    # embeddings LayerNorm on the lane-dense (T, H) slab
    x = _layer_norm(emb_ref[...], misc_ref[0:1, :H], misc_ref[1:2, :H])

    # additive attention-mask bias, loaded once and reused by every layer/head
    mask_bias = mask_ref[...]                                   # (T, T) f32

    def layer_body(li, x):
        wl = w_ref[li]                                          # (WROWS, WCOLS) bf16
        bl = b_ref[li]                                          # (8, LANE) f32

        wqkv = wl[:H, 0:3 * H]                                  # (H, 3H)
        wo   = wl[:H, 3 * H:4 * H]                              # (H, H)
        w1   = wl[:H, 4 * H:4 * H + FF]                         # (H, FF)
        w2   = wl[:FF, 4 * H + FF:4 * H + FF + H]               # (FF, H)

        bqkv = bl[0:1, 0:3 * H]
        bo   = bl[1:2, 0:H]
        g1   = bl[2:3, 0:H]
        be1  = bl[3:4, 0:H]
        bi1  = bl[4:5, 0:FF]
        bi2  = bl[5:6, 0:H]
        g2   = bl[6:7, 0:H]
        be2  = bl[7:8, 0:H]

        # fused QKV projection: one (T,H)x(H,3H) matmul
        x16 = x.astype(jnp.bfloat16)
        qkv = jnp.dot(x16, wqkv, preferred_element_type=jnp.float32) + bqkv   # (T, 3H) f32
        qkv16 = qkv.astype(jnp.bfloat16)

        # per-head attention via static 16-lane slices of the QKV slab
        ctx_heads = []
        for hd in range(NH):                                    # static, tiny
            q = qkv16[:, hd * DH:(hd + 1) * DH]                 # (T, DH)
            k = qkv16[:, H + hd * DH:H + (hd + 1) * DH]
            v = qkv16[:, 2 * H + hd * DH:2 * H + (hd + 1) * DH]
            sc = jnp.einsum('td,sd->ts', q, k,
                            preferred_element_type=jnp.float32) + mask_bias   # (T, T) f32
            m = jnp.max(sc, axis=-1, keepdims=True)
            e = jnp.exp(sc - m)
            p = e * pl.reciprocal(jnp.sum(e, axis=-1, keepdims=True), approx=True)
            ctx_heads.append(jnp.dot(p.astype(jnp.bfloat16), v,
                                     preferred_element_type=jnp.float32))      # (T, DH) f32
        ctx = jnp.concatenate(ctx_heads, axis=-1)               # (T, H) f32

        # single output projection on the concatenated heads
        attn = jnp.dot(ctx.astype(jnp.bfloat16), wo,
                       preferred_element_type=jnp.float32) + bo
        h1 = _layer_norm(x + attn, g1, be1)

        # feed-forward
        ff = jnp.dot(h1.astype(jnp.bfloat16), w1,
                     preferred_element_type=jnp.float32) + bi1
        # TODO(synk): HF BERT uses exact erf-GELU; tanh approximation used for TPU-safe lowering.
        ff = 0.5 * ff * (1.0 + jnp.tanh(0.7978845608028654 * (ff + 0.044715 * ff * ff * ff)))
        ff = jnp.dot(ff.astype(jnp.bfloat16), w2,
                     preferred_element_type=jnp.float32) + bi2

        return _layer_norm(h1 + ff, g2, be2)

    x = lax.fori_loop(0, NLAYERS, layer_body, x, unroll=True)

    # classifier head: Dropout (identity in eval) -> Linear(H, 2), computed for all T rows
    # (lane-dense (T,128) store; CLS rows are extracted outside the kernel)
    logits = jnp.dot(x.astype(jnp.bfloat16), clsw_ref[...],
                     preferred_element_type=jnp.float32) + misc_ref[2:3, :]
    out_ref[...] = logits


# ---------------- wrapper ----------------
def _full_spec(a):
    n = a.ndim
    return pl.BlockSpec(a.shape, lambda i, _n=n: (0,) * _n)


@jax.jit
def bert_classifier_forward(prep, input_ids, attention_mask):
    # embeddings: word + position + token_type(=0)  (gathers are plain-JAX glue)
    we = jnp.take(prep['word_emb'], input_ids, axis=0)             # (B, S, H)
    pe = prep['pos_emb'][:S][None, :, :]
    te = prep['type_emb'][0][None, None, :]
    emb = (we + pe + te).astype(jnp.float32).reshape(T, H)         # lane-dense slab
    # TODO(synk): all dropout layers are identity (eval/inference mode).

    # block-diagonal cross-batch isolation + key-padding mask, folded into one additive bias
    keyflat = attention_mask.reshape(T).astype(jnp.float32)        # (T,)
    bidx = jnp.repeat(jnp.arange(B, dtype=jnp.int32), S)           # (T,)
    same_batch = (bidx[:, None] == bidx[None, :]).astype(jnp.float32)
    mask_bias = (1.0 - same_batch * keyflat[None, :]) * (-1e4)     # (T, T) f32

    args = (emb, mask_bias, prep['w_slab'], prep['b_slab'], prep['misc'], prep['cls_w'])

    logits_pad = pl.pallas_call(
        fused_bert_kernel,
        out_shape=jax.ShapeDtypeStruct((T, LANE), jnp.float32),
        grid=(1,),                                  # single step: no per-batch pipeline cost
        in_specs=[_full_spec(a) for a in args],
        out_specs=pl.BlockSpec((T, LANE), lambda i: (0, 0)),
    )(*args)

    # CLS token per batch element, un-pad the classifier lanes
    return logits_pad.reshape(B, S, LANE)[:, 0, :NUM_CLASSES]      # (B, 2) f32


# ---------------- parameters (deterministic synthetic init) ----------------
def init_params(key):
    def nrm(k, shape):
        return 0.02 * jax.random.normal(k, shape, jnp.float32)

    keys = jax.random.split(key, 4 + NLAYERS)
    params = {
        'word_emb': nrm(keys[0], (VOCAB, H)),
        'pos_emb':  nrm(keys[1], (MAXPOS, H)),
        'type_emb': nrm(keys[2], (2, H)),
        'emb_ln_g': jnp.ones((1, H), jnp.float32),
        'emb_ln_b': jnp.zeros((1, H), jnp.float32),
        'cls_w':    nrm(keys[3], (H, NUM_CLASSES)),
        'cls_b':    jnp.zeros((1, NUM_CLASSES), jnp.float32),
        'layers':   [],
    }
    for li in range(NLAYERS):
        lk = jax.random.split(keys[4 + li], 6)
        params['layers'].append({
            'wq': nrm(lk[0], (H, H)), 'bq': jnp.zeros((1, H), jnp.float32),
            'wk': nrm(lk[1], (H, H)), 'bk': jnp.zeros((1, H), jnp.float32),
            'wv': nrm(lk[2], (H, H)), 'bv': jnp.zeros((1, H), jnp.float32),
            'wo': nrm(lk[3], (H, H)), 'bo': jnp.zeros((1, H), jnp.float32),
            'g1': jnp.ones((1, H), jnp.float32), 'be1': jnp.zeros((1, H), jnp.float32),
            'w1': nrm(lk[4], (H, FF)), 'bi1': jnp.zeros((1, FF), jnp.float32),
            'w2': nrm(lk[5], (FF, H)), 'bi2': jnp.zeros((1, H), jnp.float32),
            'g2': jnp.ones((1, H), jnp.float32), 'be2': jnp.zeros((1, H), jnp.float32),
        })
    return params


def prepare_params(p):
    """One-time packing for the fused kernel: QKV fused per layer (1/sqrt(DH) folded into
    the Q columns/bias), all matmul weights packed into one bf16 slab per layer, all
    biases/LayerNorm params into one f32 (8,128) row-slab per layer, classifier padded to
    128 lanes."""
    L = len(p['layers'])
    scale = 1.0 / (DH ** 0.5)

    w_slab = jnp.zeros((L, WROWS, WCOLS), jnp.float32)
    b_slab = jnp.zeros((L, 8, LANE), jnp.float32)
    for li, lyr in enumerate(p['layers']):
        wqkv = jnp.concatenate([lyr['wq'] * scale, lyr['wk'], lyr['wv']], axis=1)  # (H, 3H)
        w_slab = w_slab.at[li, :H, 0:3 * H].set(wqkv)
        w_slab = w_slab.at[li, :H, 3 * H:4 * H].set(lyr['wo'])
        w_slab = w_slab.at[li, :H, 4 * H:4 * H + FF].set(lyr['w1'])
        w_slab = w_slab.at[li, :FF, 4 * H + FF:4 * H + FF + H].set(lyr['w2'])

        bqkv = jnp.concatenate([lyr['bq'][0] * scale, lyr['bk'][0], lyr['bv'][0]])  # (3H,)
        b_slab = b_slab.at[li, 0, 0:3 * H].set(bqkv)
        b_slab = b_slab.at[li, 1, 0:H].set(lyr['bo'][0])
        b_slab = b_slab.at[li, 2, 0:H].set(lyr['g1'][0])
        b_slab = b_slab.at[li, 3, 0:H].set(lyr['be1'][0])
        b_slab = b_slab.at[li, 4, 0:FF].set(lyr['bi1'][0])
        b_slab = b_slab.at[li, 5, 0:H].set(lyr['bi2'][0])
        b_slab = b_slab.at[li, 6, 0:H].set(lyr['g2'][0])
        b_slab = b_slab.at[li, 7, 0:H].set(lyr['be2'][0])

    misc = jnp.zeros((8, LANE), jnp.float32)
    misc = misc.at[0, 0:H].set(p['emb_ln_g'][0])
    misc = misc.at[1, 0:H].set(p['emb_ln_b'][0])
    misc = misc.at[2, 0:NUM_CLASSES].set(p['cls_b'][0])

    cls_w = jnp.zeros((H, LANE), jnp.float32).at[:, :NUM_CLASSES].set(p['cls_w'])

    return {
        'word_emb': p['word_emb'], 'pos_emb': p['pos_emb'], 'type_emb': p['type_emb'],
        'w_slab': w_slab.astype(jnp.bfloat16),
        'b_slab': b_slab,
        'misc':   misc,
        'cls_w':  cls_w.astype(jnp.bfloat16),
    }


if __name__ == "__main__":
    key = jax.random.PRNGKey(0)
    pkey, ikey = jax.random.split(key)
    params = init_params(pkey)
    prep = prepare_params(params)

    input_ids = jax.random.randint(ikey, (B, S), 0, VOCAB, dtype=jnp.int32)
    attention_mask = jnp.ones((B, S), jnp.int32)

    logits = bert_classifier_forward(prep, input_ids, attention_mask)
    jax.block_until_ready(logits)
    assert logits.shape == (B, NUM_CLASSES) and logits.dtype == jnp.float32
    assert bool(jnp.all(jnp.isfinite(logits)))
    print("KERNEL_OK")
</pallas_src>

<mosaic_0001>
module attributes {stable_mosaic.version = 11 : i64} {
  func.func @fused_bert_kernel(%arg0: i32, %arg1: memref<16x32xf32, #tpu.memory_space<vmem>>, %arg2: memref<16x16xf32, #tpu.memory_space<vmem>>, %arg3: memref<2x64x224xbf16, #tpu.memory_space<vmem>>, %arg4: memref<2x8x128xf32, #tpu.memory_space<vmem>>, %arg5: memref<8x128xf32, #tpu.memory_space<vmem>>, %arg6: memref<32x128xbf16, #tpu.memory_space<vmem>>, %arg7: memref<16x128xf32, #tpu.memory_space<vmem>>) attributes {dimension_semantics = [#tpu.dimension_semantics<arbitrary>], iteration_bounds = array<i64: 1>, scalar_prefetch = 0 : i64, scratch_operands = 0 : i64, tpu.core_type = #tpu.core_type<tc>, window_params = [{pipeline_mode = #tpu.pipeline_mode<synchronous>, transform_indices = @transform_0, window_bounds = array<i64: 16, 32>}, {pipeline_mode = #tpu.pipeline_mode<synchronous>, transform_indices = @transform_1, window_bounds = array<i64: 16, 16>}, {pipeline_mode = #tpu.pipeline_mode<synchronous>, transform_indices = @transform_2, window_bounds = array<i64: 2, 64, 224>}, {pipeline_mode = #tpu.pipeline_mode<synchronous>, transform_indices = @transform_3, window_bounds = array<i64: 2, 8, 128>}, {pipeline_mode = #tpu.pipeline_mode<synchronous>, transform_indices = @transform_4, window_bounds = array<i64: 8, 128>}, {pipeline_mode = #tpu.pipeline_mode<synchronous>, transform_indices = @transform_5, window_bounds = array<i64: 32, 128>}, {pipeline_mode = #tpu.pipeline_mode<synchronous>, transform_indices = @transform_6, window_bounds = array<i64: 16, 128>}]} {
    %c0 = arith.constant 0 : index
    %c0_0 = arith.constant 0 : index
    %0 = vector.load %arg1[%c0, %c0_0] : memref<16x32xf32, #tpu.memory_space<vmem>>, vector<16x32xf32>
    %c0_1 = arith.constant 0 : index
    %c0_2 = arith.constant 0 : index
    %1 = vector.load %arg5[%c0_1, %c0_2] : memref<8x128xf32, #tpu.memory_space<vmem>>, vector<1x32xf32>
    %c1 = arith.constant 1 : index
    %c0_3 = arith.constant 0 : index
    %2 = vector.load %arg5[%c1, %c0_3] : memref<8x128xf32, #tpu.memory_space<vmem>>, vector<1x32xf32>
    %cst = arith.constant dense<0.000000e+00> : vector<16xf32>
    %3 = vector.multi_reduction <add>, %0, %cst [1] : vector<16x32xf32> to vector<16xf32>
    %4 = vector.shape_cast %3 : vector<16xf32> to vector<16x1xf32>
    %cst_4 = arith.constant 3.200000e+01 : f32
    %5 = vector.broadcast %cst_4 : f32 to vector<16x1xf32>
    %6 = arith.divf %4, %5 : vector<16x1xf32>
    %7 = vector.broadcast %6 : vector<16x1xf32> to vector<16x32xf32>
    %8 = arith.subf %0, %7 : vector<16x32xf32>
    %9 = arith.mulf %8, %8 : vector<16x32xf32>
    %cst_5 = arith.constant dense<0.000000e+00> : vector<16xf32>
    %10 = vector.multi_reduction <add>, %9, %cst_5 [1] : vector<16x32xf32> to vector<16xf32>
    %11 = vector.shape_cast %10 : vector<16xf32> to vector<16x1xf32>
    %cst_6 = arith.constant 3.200000e+01 : f32
    %12 = vector.broadcast %cst_6 : f32 to vector<16x1xf32>
    %13 = arith.divf %11, %12 : vector<16x1xf32>
    %14 = vector.broadcast %6 : vector<16x1xf32> to vector<16x32xf32>
    %15 = arith.subf %0, %14 : vector<16x32xf32>
    %cst_7 = arith.constant 9.99999996E-13 : f32
    %16 = vector.broadcast %cst_7 : f32 to vector<16x1xf32>
    %17 = arith.addf %13, %16 : vector<16x1xf32>
    %18 = math.rsqrt %17 : vector<16x1xf32>
    %19 = vector.broadcast %18 : vector<16x1xf32> to vector<16x32xf32>
    %20 = arith.mulf %15, %19 : vector<16x32xf32>
    %21 = vector.broadcast %1 : vector<1x32xf32> to vector<16x32xf32>
    %22 = arith.mulf %20, %21 : vector<16x32xf32>
    %23 = vector.broadcast %2 : vector<1x32xf32> to vector<16x32xf32>
    %24 = arith.addf %22, %23 : vector<16x32xf32>
    %c0_8 = arith.constant 0 : index
    %c0_9 = arith.constant 0 : index
    %25 = vector.load %arg2[%c0_8, %c0_9] : memref<16x16xf32, #tpu.memory_space<vmem>>, vector<16x16xf32>
    %c0_i32 = arith.constant 0 : i32
    %26 = arith.index_cast %c0_i32 : i32 to index
    %c0_10 = arith.constant 0 : index
    %c0_11 = arith.constant 0 : index
    %27 = vector.load %arg3[%26, %c0_10, %c0_11] : memref<2x64x224xbf16, #tpu.memory_space<vmem>>, vector<1x64x224xbf16>
    %28 = vector.shape_cast %27 : vector<1x64x224xbf16> to vector<64x224xbf16>
    %29 = arith.index_cast %c0_i32 : i32 to index
    %c0_12 = arith.constant 0 : index
    %c0_13 = arith.constant 0 : index
    %30 = vector.load %arg4[%29, %c0_12, %c0_13] : memref<2x8x128xf32, #tpu.memory_space<vmem>>, vector<1x8x128xf32>
    %31 = vector.shape_cast %30 : vector<1x8x128xf32> to vector<8x128xf32>
    %32 = vector.extract_strided_slice %28 {offsets = [0, 0], sizes = [32, 96], strides = [1, 1]} : vector<64x224xbf16> to vector<32x96xbf16>
    %33 = vector.extract_strided_slice %28 {offsets = [0, 96], sizes = [32, 32], strides = [1, 1]} : vector<64x224xbf16> to vector<32x32xbf16>
    %34 = vector.extract_strided_slice %28 {offsets = [0, 128], sizes = [32, 64], strides = [1, 1]} : vector<64x224xbf16> to vector<32x64xbf16>
    %35 = vector.extract_strided_slice %28 {offsets = [0, 192], sizes = [64, 32], strides = [1, 1]} : vector<64x224xbf16> to vector<64x32xbf16>
    %36 = vector.extract_strided_slice %31 {offsets = [0, 0], sizes = [1, 96], strides = [1, 1]} : vector<8x128xf32> to vector<1x96xf32>
    %37 = vector.extract_strided_slice %31 {offsets = [1, 0], sizes = [1, 32], strides = [1, 1]} : vector<8x128xf32> to vector<1x32xf32>
    %38 = vector.extract_strided_slice %31 {offsets = [2, 0], sizes = [1, 32], strides = [1, 1]} : vector<8x128xf32> to vector<1x32xf32>
    %39 = vector.extract_strided_slice %31 {offsets = [3, 0], sizes = [1, 32], strides = [1, 1]} : vector<8x128xf32> to vector<1x32xf32>
    %40 = vector.extract_strided_slice %31 {offsets = [4, 0], sizes = [1, 64], strides = [1, 1]} : vector<8x128xf32> to vector<1x64xf32>
    %41 = vector.extract_strided_slice %31 {offsets = [5, 0], sizes = [1, 32], strides = [1, 1]} : vector<8x128xf32> to vector<1x32xf32>
    %42 = vector.extract_strided_slice %31 {offsets = [6, 0], sizes = [1, 32], strides = [1, 1]} : vector<8x128xf32> to vector<1x32xf32>
    %43 = vector.extract_strided_slice %31 {offsets = [7, 0], sizes = [1, 32], strides = [1, 1]} : vector<8x128xf32> to vector<1x32xf32>
    %44 = arith.truncf %24 : vector<16x32xf32> to vector<16x32xbf16>
    %cst_14 = arith.constant dense<0.000000e+00> : vector<16x96xf32>
    %45 = tpu.matmul %44, %32, %cst_14 {dimension_numbers = #tpu.dot_dimension_numbers<[1], [0], [0], [1], [0, 0, 1, 1], [], []>} : vector<16x32xbf16>, vector<32x96xbf16>, vector<16x96xf32> -> vector<16x96xf32>
    %46 = vector.broadcast %36 : vector<1x96xf32> to vector<16x96xf32>
    %47 = arith.addf %45, %46 : vector<16x96xf32>
    %48 = arith.truncf %47 : vector<16x96xf32> to vector<16x96xbf16>
    %49 = vector.extract_strided_slice %48 {offsets = [0, 0], sizes = [16, 16], strides = [1, 1]} : vector<16x96xbf16> to vector<16x16xbf16>
    %50 = vector.extract_strided_slice %48 {offsets = [0, 32], sizes = [16, 16], strides = [1, 1]} : vector<16x96xbf16> to vector<16x16xbf16>
    %51 = vector.extract_strided_slice %48 {offsets = [0, 64], sizes = [16, 16], strides = [1, 1]} : vector<16x96xbf16> to vector<16x16xbf16>
    "tpu.trace_start"() <{level = 10 : i32, message = "td,sd->ts"}> : () -> ()
    %cst_15 = arith.constant dense<0.000000e+00> : vector<16x16xf32>
    %52 = tpu.matmul %49, %50, %cst_15 {dimension_numbers = #tpu.dot_dimension_numbers<[1], [1], [0], [0], [0, 0, 1, 0], [], []>} : vector<16x16xbf16>, vector<16x16xbf16>, vector<16x16xf32> -> vector<16x16xf32>
    "tpu.trace_stop"() : () -> ()
    %53 = arith.addf %52, %25 : vector<16x16xf32>
    %cst_16 = arith.constant dense<0xFF800000> : vector<16xf32>
    %54 = vector.multi_reduction <maximumf>, %53, %cst_16 [1] : vector<16x16xf32> to vector<16xf32>
    %55 = vector.shape_cast %54 : vector<16xf32> to vector<16x1xf32>
    %56 = vector.broadcast %55 : vector<16x1xf32> to vector<16x16xf32>
    %57 = arith.subf %53, %56 : vector<16x16xf32>
    %58 = math.exp %57 : vector<16x16xf32>
    %cst_17 = arith.constant dense<0.000000e+00> : vector<16xf32>
    %59 = vector.multi_reduction <add>, %58, %cst_17 [1] : vector<16x16xf32> to vector<16xf32>
    %60 = vector.shape_cast %59 : vector<16xf32> to vector<16x1xf32>
    %61 = tpu.reciprocal %60 {approx = true} : vector<16x1xf32> -> vector<16x1xf32>
    %62 = vector.broadcast %61 : vector<16x1xf32> to vector<16x16xf32>
    %63 = arith.mulf %58, %62 : vector<16x16xf32>
    %64 = arith.truncf %63 : vector<16x16xf32> to vector<16x16xbf16>
    %cst_18 = arith.constant dense<0.000000e+00> : vector<16x16xf32>
    %65 = tpu.matmul %64, %51, %cst_18 {dimension_numbers = #tpu.dot_dimension_numbers<[1], [0], [0], [1], [0, 0, 1, 1], [], []>} : vector<16x16xbf16>, vector<16x16xbf16>, vector<16x16xf32> -> vector<16x16xf32>
    %66 = vector.extract_strided_slice %48 {offsets = [0, 16], sizes = [16, 16], strides = [1, 1]} : vector<16x96xbf16> to vector<16x16xbf16>
    %67 = vector.extract_strided_slice %48 {offsets = [0, 48], sizes = [16, 16], strides = [1, 1]} : vector<16x96xbf16> to vector<16x16xbf16>
    %68 = vector.extract_strided_slice %48 {offsets = [0, 80], sizes = [16, 16], strides = [1, 1]} : vector<16x96xbf16> to vector<16x16xbf16>
    "tpu.trace_start"() <{level = 10 : i32, message = "td,sd->ts"}> : () -> ()
    %cst_19 = arith.constant dense<0.000000e+00> : vector<16x16xf32>
    %69 = tpu.matmul %66, %67, %cst_19 {dimension_numbers = #tpu.dot_dimension_numbers<[1], [1], [0], [0], [0, 0, 1, 0], [], []>} : vector<16x16xbf16>, vector<16x16xbf16>, vector<16x16xf32> -> vector<16x16xf32>
    "tpu.trace_stop"() : () -> ()
    %70 = arith.addf %69, %25 : vector<16x16xf32>
    %cst_20 = arith.constant dense<0xFF800000> : vector<16xf32>
    %71 = vector.multi_reduction <maximumf>, %70, %cst_20 [1] : vector<16x16xf32> to vector<16xf32>
    %72 = vector.shape_cast %71 : vector<16xf32> to vector<16x1xf32>
    %73 = vector.broadcast %72 : vector<16x1xf32> to vector<16x16xf32>
    %74 = arith.subf %70, %73 : vector<16x16xf32>
    %75 = math.exp %74 : vector<16x16xf32>
    %cst_21 = arith.constant dense<0.000000e+00> : vector<16xf32>
    %76 = vector.multi_reduction <add>, %75, %cst_21 [1] : vector<16x16xf32> to vector<16xf32>
    %77 = vector.shape_cast %76 : vector<16xf32> to vector<16x1xf32>
    %78 = tpu.reciprocal %77 {approx = true} : vector<16x1xf32> -> vector<16x1xf32>
    %79 = vector.broadcast %78 : vector<16x1xf32> to vector<16x16xf32>
    %80 = arith.mulf %75, %79 : vector<16x16xf32>
    %81 = arith.truncf %80 : vector<16x16xf32> to vector<16x16xbf16>
    %cst_22 = arith.constant dense<0.000000e+00> : vector<16x16xf32>
    %82 = tpu.matmul %81, %68, %cst_22 {dimension_numbers = #tpu.dot_dimension_numbers<[1], [0], [0], [1], [0, 0, 1, 1], [], []>} : vector<16x16xbf16>, vector<16x16xbf16>, vector<16x16xf32> -> vector<16x16xf32>
    %83 = tpu.concatenate %65, %82 in 1 : vector<16x16xf32>, vector<16x16xf32> -> vector<16x32xf32>
    %84 = arith.truncf %83 : vector<16x32xf32> to vector<16x32xbf16>
    %cst_23 = arith.constant dense<0.000000e+00> : vector<16x32xf32>
    %85 = tpu.matmul %84, %33, %cst_23 {dimension_numbers = #tpu.dot_dimension_numbers<[1], [0], [0], [1], [0, 0, 1, 1], [], []>} : vector<16x32xbf16>, vector<32x32xbf16>, vector<16x32xf32> -> vector<16x32xf32>
    %86 = vector.broadcast %37 : vector<1x32xf32> to vector<16x32xf32>
    %87 = arith.addf %85, %86 : vector<16x32xf32>
    %88 = arith.addf %24, %87 : vector<16x32xf32>
    %cst_24 = arith.constant dense<0.000000e+00> : vector<16xf32>
    %89 = vector.multi_reduction <add>, %88, %cst_24 [1] : vector<16x32xf32> to vector<16xf32>
    %90 = vector.shape_cast %89 : vector<16xf32> to vector<16x1xf32>
    %cst_25 = arith.constant 3.200000e+01 : f32
    %91 = vector.broadcast %cst_25 : f32 to vector<16x1xf32>
    %92 = arith.divf %90, %91 : vector<16x1xf32>
    %93 = vector.broadcast %92 : vector<16x1xf32> to vector<16x32xf32>
    %94 = arith.subf %88, %93 : vector<16x32xf32>
    %95 = arith.mulf %94, %94 : vector<16x32xf32>
    %cst_26 = arith.constant dense<0.000000e+00> : vector<16xf32>
    %96 = vector.multi_reduction <add>, %95, %cst_26 [1] : vector<16x32xf32> to vector<16xf32>
    %97 = vector.shape_cast %96 : vector<16xf32> to vector<16x1xf32>
    %cst_27 = arith.constant 3.200000e+01 : f32
    %98 = vector.broadcast %cst_27 : f32 to vector<16x1xf32>
    %99 = arith.divf %97, %98 : vector<16x1xf32>
    %100 = vector.broadcast %92 : vector<16x1xf32> to vector<16x32xf32>
    %101 = arith.subf %88, %100 : vector<16x32xf32>
    %cst_28 = arith.constant 9.99999996E-13 : f32
    %102 = vector.broadcast %cst_28 : f32 to vector<16x1xf32>
    %103 = arith.addf %99, %102 : vector<16x1xf32>
    %104 = math.rsqrt %103 : vector<16x1xf32>
    %105 = vector.broadcast %104 : vector<16x1xf32> to vector<16x32xf32>
    %106 = arith.mulf %101, %105 : vector<16x32xf32>
    %107 = vector.broadcast %38 : vector<1x32xf32> to vector<16x32xf32>
    %108 = arith.mulf %106, %107 : vector<16x32xf32>
    %109 = vector.broadcast %39 : vector<1x32xf32> to vector<16x32xf32>
    %110 = arith.addf %108, %109 : vector<16x32xf32>
    %111 = arith.truncf %110 : vector<16x32xf32> to vector<16x32xbf16>
    %cst_29 = arith.constant dense<0.000000e+00> : vector<16x64xf32>
    %112 = tpu.matmul %111, %34, %cst_29 {dimension_numbers = #tpu.dot_dimension_numbers<[1], [0], [0], [1], [0, 0, 1, 1], [], []>} : vector<16x32xbf16>, vector<32x64xbf16>, vector<16x64xf32> -> vector<16x64xf32>
    %113 = vector.broadcast %40 : vector<1x64xf32> to vector<16x64xf32>
    %114 = arith.addf %112, %113 : vector<16x64xf32>
    %cst_30 = arith.constant 5.000000e-01 : f32
    %115 = vector.broadcast %cst_30 : f32 to vector<16x64xf32>
    %116 = arith.mulf %115, %114 : vector<16x64xf32>
    %cst_31 = arith.constant 4.471500e-02 : f32
    %117 = vector.broadcast %cst_31 : f32 to vector<16x64xf32>
    %118 = arith.mulf %117, %114 : vector<16x64xf32>
    %119 = arith.mulf %118, %114 : vector<16x64xf32>
    %120 = arith.mulf %119, %114 : vector<16x64xf32>
    %121 = arith.addf %114, %120 : vector<16x64xf32>
    %cst_32 = arith.constant 0.797884583 : f32
    %122 = vector.broadcast %cst_32 : f32 to vector<16x64xf32>
    %123 = arith.mulf %122, %121 : vector<16x64xf32>
    %124 = math.tanh %123 : vector<16x64xf32>
    %cst_33 = arith.constant 1.000000e+00 : f32
    %125 = vector.broadcast %cst_33 : f32 to vector<16x64xf32>
    %126 = arith.addf %125, %124 : vector<16x64xf32>
    %127 = arith.mulf %116, %126 : vector<16x64xf32>
    %128 = arith.truncf %127 : vector<16x64xf32> to vector<16x64xbf16>
    %cst_34 = arith.constant dense<0.000000e+00> : vector<16x32xf32>
    %129 = tpu.matmul %128, %35, %cst_34 {dimension_numbers = #tpu.dot_dimension_numbers<[1], [0], [0], [1], [0, 0, 1, 1], [], []>} : vector<16x64xbf16>, vector<64x32xbf16>, vector<16x32xf32> -> vector<16x32xf32>
    %130 = vector.broadcast %41 : vector<1x32xf32> to vector<16x32xf32>
    %131 = arith.addf %129, %130 : vector<16x32xf32>
    %132 = arith.addf %110, %131 : vector<16x32xf32>
    %cst_35 = arith.constant dense<0.000000e+00> : vector<16xf32>
    %133 = vector.multi_reduction <add>, %132, %cst_35 [1] : vector<16x32xf32> to vector<16xf32>
    %134 = vector.shape_cast %133 : vector<16xf32> to vector<16x1xf32>
    %cst_36 = arith.constant 3.200000e+01 : f32
    %135 = vector.broadcast %cst_36 : f32 to vector<16x1xf32>
    %136 = arith.divf %134, %135 : vector<16x1xf32>
    %137 = vector.broadcast %136 : vector<16x1xf32> to vector<16x32xf32>
    %138 = arith.subf %132, %137 : vector<16x32xf32>
    %139 = arith.mulf %138, %138 : vector<16x32xf32>
    %cst_37 = arith.constant dense<0.000000e+00> : vector<16xf32>
    %140 = vector.multi_reduction <add>, %139, %cst_37 [1] : vector<16x32xf32> to vector<16xf32>
    %141 = vector.shape_cast %140 : vector<16xf32> to vector<16x1xf32>
    %cst_38 = arith.constant 3.200000e+01 : f32
    %142 = vector.broadcast %cst_38 : f32 to vector<16x1xf32>
    %143 = arith.divf %141, %142 : vector<16x1xf32>
    %144 = vector.broadcast %136 : vector<16x1xf32> to vector<16x32xf32>
    %145 = arith.subf %132, %144 : vector<16x32xf32>
    %cst_39 = arith.constant 9.99999996E-13 : f32
    %146 = vector.broadcast %cst_39 : f32 to vector<16x1xf32>
    %147 = arith.addf %143, %146 : vector<16x1xf32>
    %148 = math.rsqrt %147 : vector<16x1xf32>
    %149 = vector.broadcast %148 : vector<16x1xf32> to vector<16x32xf32>
    %150 = arith.mulf %145, %149 : vector<16x32xf32>
    %151 = vector.broadcast %42 : vector<1x32xf32> to vector<16x32xf32>
    %152 = arith.mulf %150, %151 : vector<16x32xf32>
    %153 = vector.broadcast %43 : vector<1x32xf32> to vector<16x32xf32>
    %154 = arith.addf %152, %153 : vector<16x32xf32>
    %c1_i32 = arith.constant 1 : i32
    %155 = arith.index_cast %c1_i32 : i32 to index
    %c0_40 = arith.constant 0 : index
    %c0_41 = arith.constant 0 : index
    %156 = vector.load %arg3[%155, %c0_40, %c0_41] : memref<2x64x224xbf16, #tpu.memory_space<vmem>>, vector<1x64x224xbf16>
    %157 = vector.shape_cast %156 : vector<1x64x224xbf16> to vector<64x224xbf16>
    %158 = arith.index_cast %c1_i32 : i32 to index
    %c0_42 = arith.constant 0 : index
    %c0_43 = arith.constant 0 : index
    %159 = vector.load %arg4[%158, %c0_42, %c0_43] : memref<2x8x128xf32, #tpu.memory_space<vmem>>, vector<1x8x128xf32>
    %160 = vector.shape_cast %159 : vector<1x8x128xf32> to vector<8x128xf32>
    %161 = vector.extract_strided_slice %157 {offsets = [0, 0], sizes = [32, 96], strides = [1, 1]} : vector<64x224xbf16> to vector<32x96xbf16>
    %162 = vector.extract_strided_slice %157 {offsets = [0, 96], sizes = [32, 32], strides = [1, 1]} : vector<64x224xbf16> to vector<32x32xbf16>
    %163 = vector.extract_strided_slice %157 {offsets = [0, 128], sizes = [32, 64], strides = [1, 1]} : vector<64x224xbf16> to vector<32x64xbf16>
    %164 = vector.extract_strided_slice %157 {offsets = [0, 192], sizes = [64, 32], strides = [1, 1]} : vector<64x224xbf16> to vector<64x32xbf16>
    %165 = vector.extract_strided_slice %160 {offsets = [0, 0], sizes = [1, 96], strides = [1, 1]} : vector<8x128xf32> to vector<1x96xf32>
    %166 = vector.extract_strided_slice %160 {offsets = [1, 0], sizes = [1, 32], strides = [1, 1]} : vector<8x128xf32> to vector<1x32xf32>
    %167 = vector.extract_strided_slice %160 {offsets = [2, 0], sizes = [1, 32], strides = [1, 1]} : vector<8x128xf32> to vector<1x32xf32>
    %168 = vector.extract_strided_slice %160 {offsets = [3, 0], sizes = [1, 32], strides = [1, 1]} : vector<8x128xf32> to vector<1x32xf32>
    %169 = vector.extract_strided_slice %160 {offsets = [4, 0], sizes = [1, 64], strides = [1, 1]} : vector<8x128xf32> to vector<1x64xf32>
    %170 = vector.extract_strided_slice %160 {offsets = [5, 0], sizes = [1, 32], strides = [1, 1]} : vector<8x128xf32> to vector<1x32xf32>
    %171 = vector.extract_strided_slice %160 {offsets = [6, 0], sizes = [1, 32], strides = [1, 1]} : vector<8x128xf32> to vector<1x32xf32>
    %172 = vector.extract_strided_slice %160 {offsets = [7, 0], sizes = [1, 32], strides = [1, 1]} : vector<8x128xf32> to vector<1x32xf32>
    %173 = arith.truncf %154 : vector<16x32xf32> to vector<16x32xbf16>
    %cst_44 = arith.constant dense<0.000000e+00> : vector<16x96xf32>
    %174 = tpu.matmul %173, %161, %cst_44 {dimension_numbers = #tpu.dot_dimension_numbers<[1], [0], [0], [1], [0, 0, 1, 1], [], []>} : vector<16x32xbf16>, vector<32x96xbf16>, vector<16x96xf32> -> vector<16x96xf32>
    %175 = vector.broadcast %165 : vector<1x96xf32> to vector<16x96xf32>
    %176 = arith.addf %174, %175 : vector<16x96xf32>
    %177 = arith.truncf %176 : vector<16x96xf32> to vector<16x96xbf16>
    %178 = vector.extract_strided_slice %177 {offsets = [0, 0], sizes = [16, 16], strides = [1, 1]} : vector<16x96xbf16> to vector<16x16xbf16>
    %179 = vector.extract_strided_slice %177 {offsets = [0, 32], sizes = [16, 16], strides = [1, 1]} : vector<16x96xbf16> to vector<16x16xbf16>
    %180 = vector.extract_strided_slice %177 {offsets = [0, 64], sizes = [16, 16], strides = [1, 1]} : vector<16x96xbf16> to vector<16x16xbf16>
    "tpu.trace_start"() <{level = 10 : i32, message = "td,sd->ts"}> : () -> ()
    %cst_45 = arith.constant dense<0.000000e+00> : vector<16x16xf32>
    %181 = tpu.matmul %178, %179, %cst_45 {dimension_numbers = #tpu.dot_dimension_numbers<[1], [1], [0], [0], [0, 0, 1, 0], [], []>} : vector<16x16xbf16>, vector<16x16xbf16>, vector<16x16xf32> -> vector<16x16xf32>
    "tpu.trace_stop"() : () -> ()
    %182 = arith.addf %181, %25 : vector<16x16xf32>
    %cst_46 = arith.constant dense<0xFF800000> : vector<16xf32>
    %183 = vector.multi_reduction <maximumf>, %182, %cst_46 [1] : vector<16x16xf32> to vector<16xf32>
    %184 = vector.shape_cast %183 : vector<16xf32> to vector<16x1xf32>
    %185 = vector.broadcast %184 : vector<16x1xf32> to vector<16x16xf32>
    %186 = arith.subf %182, %185 : vector<16x16xf32>
    %187 = math.exp %186 : vector<16x16xf32>
    %cst_47 = arith.constant dense<0.000000e+00> : vector<16xf32>
    %188 = vector.multi_reduction <add>, %187, %cst_47 [1] : vector<16x16xf32> to vector<16xf32>
    %189 = vector.shape_cast %188 : vector<16xf32> to vector<16x1xf32>
    %190 = tpu.reciprocal %189 {approx = true} : vector<16x1xf32> -> vector<16x1xf32>
    %191 = vector.broadcast %190 : vector<16x1xf32> to vector<16x16xf32>
    %192 = arith.mulf %187, %191 : vector<16x16xf32>
    %193 = arith.truncf %192 : vector<16x16xf32> to vector<16x16xbf16>
    %cst_48 = arith.constant dense<0.000000e+00> : vector<16x16xf32>
    %194 = tpu.matmul %193, %180, %cst_48 {dimension_numbers = #tpu.dot_dimension_numbers<[1], [0], [0], [1], [0, 0, 1, 1], [], []>} : vector<16x16xbf16>, vector<16x16xbf16>, vector<16x16xf32> -> vector<16x16xf32>
    %195 = vector.extract_strided_slice %177 {offsets = [0, 16], sizes = [16, 16], strides = [1, 1]} : vector<16x96xbf16> to vector<16x16xbf16>
    %196 = vector.extract_strided_slice %177 {offsets = [0, 48], sizes = [16, 16], strides = [1, 1]} : vector<16x96xbf16> to vector<16x16xbf16>
    %197 = vector.extract_strided_slice %177 {offsets = [0, 80], sizes = [16, 16], strides = [1, 1]} : vector<16x96xbf16> to vector<16x16xbf16>
    "tpu.trace_start"() <{level = 10 : i32, message = "td,sd->ts"}> : () -> ()
    %cst_49 = arith.constant dense<0.000000e+00> : vector<16x16xf32>
    %198 = tpu.matmul %195, %196, %cst_49 {dimension_numbers = #tpu.dot_dimension_numbers<[1], [1], [0], [0], [0, 0, 1, 0], [], []>} : vector<16x16xbf16>, vector<16x16xbf16>, vector<16x16xf32> -> vector<16x16xf32>
    "tpu.trace_stop"() : () -> ()
    %199 = arith.addf %198, %25 : vector<16x16xf32>
    %cst_50 = arith.constant dense<0xFF800000> : vector<16xf32>
    %200 = vector.multi_reduction <maximumf>, %199, %cst_50 [1] : vector<16x16xf32> to vector<16xf32>
    %201 = vector.shape_cast %200 : vector<16xf32> to vector<16x1xf32>
    %202 = vector.broadcast %201 : vector<16x1xf32> to vector<16x16xf32>
    %203 = arith.subf %199, %202 : vector<16x16xf32>
    %204 = math.exp %203 : vector<16x16xf32>
    %cst_51 = arith.constant dense<0.000000e+00> : vector<16xf32>
    %205 = vector.multi_reduction <add>, %204, %cst_51 [1] : vector<16x16xf32> to vector<16xf32>
    %206 = vector.shape_cast %205 : vector<16xf32> to vector<16x1xf32>
    %207 = tpu.reciprocal %206 {approx = true} : vector<16x1xf32> -> vector<16x1xf32>
    %208 = vector.broadcast %207 : vector<16x1xf32> to vector<16x16xf32>
    %209 = arith.mulf %204, %208 : vector<16x16xf32>
    %210 = arith.truncf %209 : vector<16x16xf32> to vector<16x16xbf16>
    %cst_52 = arith.constant dense<0.000000e+00> : vector<16x16xf32>
    %211 = tpu.matmul %210, %197, %cst_52 {dimension_numbers = #tpu.dot_dimension_numbers<[1], [0], [0], [1], [0, 0, 1, 1], [], []>} : vector<16x16xbf16>, vector<16x16xbf16>, vector<16x16xf32> -> vector<16x16xf32>
    %212 = tpu.concatenate %194, %211 in 1 : vector<16x16xf32>, vector<16x16xf32> -> vector<16x32xf32>
    %213 = arith.truncf %212 : vector<16x32xf32> to vector<16x32xbf16>
    %cst_53 = arith.constant dense<0.000000e+00> : vector<16x32xf32>
    %214 = tpu.matmul %213, %162, %cst_53 {dimension_numbers = #tpu.dot_dimension_numbers<[1], [0], [0], [1], [0, 0, 1, 1], [], []>} : vector<16x32xbf16>, vector<32x32xbf16>, vector<16x32xf32> -> vector<16x32xf32>
    %215 = vector.broadcast %166 : vector<1x32xf32> to vector<16x32xf32>
    %216 = arith.addf %214, %215 : vector<16x32xf32>
    %217 = arith.addf %154, %216 : vector<16x32xf32>
    %cst_54 = arith.constant dense<0.000000e+00> : vector<16xf32>
    %218 = vector.multi_reduction <add>, %217, %cst_54 [1] : vector<16x32xf32> to vector<16xf32>
    %219 = vector.shape_cast %218 : vector<16xf32> to vector<16x1xf32>
    %cst_55 = arith.constant 3.200000e+01 : f32
    %220 = vector.broadcast %cst_55 : f32 to vector<16x1xf32>
    %221 = arith.divf %219, %220 : vector<16x1xf32>
    %222 = vector.broadcast %221 : vector<16x1xf32> to vector<16x32xf32>
    %223 = arith.subf %217, %222 : vector<16x32xf32>
    %224 = arith.mulf %223, %223 : vector<16x32xf32>
    %cst_56 = arith.constant dense<0.000000e+00> : vector<16xf32>
    %225 = vector.multi_reduction <add>, %224, %cst_56 [1] : vector<16x32xf32> to vector<16xf32>
    %226 = vector.shape_cast %225 : vector<16xf32> to vector<16x1xf32>
    %cst_57 = arith.constant 3.200000e+01 : f32
    %227 = vector.broadcast %cst_57 : f32 to vector<16x1xf32>
    %228 = arith.divf %226, %227 : vector<16x1xf32>
    %229 = vector.broadcast %221 : vector<16x1xf32> to vector<16x32xf32>
    %230 = arith.subf %217, %229 : vector<16x32xf32>
    %cst_58 = arith.constant 9.99999996E-13 : f32
    %231 = vector.broadcast %cst_58 : f32 to vector<16x1xf32>
    %232 = arith.addf %228, %231 : vector<16x1xf32>
    %233 = math.rsqrt %232 : vector<16x1xf32>
    %234 = vector.broadcast %233 : vector<16x1xf32> to vector<16x32xf32>
    %235 = arith.mulf %230, %234 : vector<16x32xf32>
    %236 = vector.broadcast %167 : vector<1x32xf32> to vector<16x32xf32>
    %237 = arith.mulf %235, %236 : vector<16x32xf32>
    %238 = vector.broadcast %168 : vector<1x32xf32> to vector<16x32xf32>
    %239 = arith.addf %237, %238 : vector<16x32xf32>
    %240 = arith.truncf %239 : vector<16x32xf32> to vector<16x32xbf16>
    %cst_59 = arith.constant dense<0.000000e+00> : vector<16x64xf32>
    %241 = tpu.matmul %240, %163, %cst_59 {dimension_numbers = #tpu.dot_dimension_numbers<[1], [0], [0], [1], [0, 0, 1, 1], [], []>} : vector<16x32xbf16>, vector<32x64xbf16>, vector<16x64xf32> -> vector<16x64xf32>
    %242 = vector.broadcast %169 : vector<1x64xf32> to vector<16x64xf32>
    %243 = arith.addf %241, %242 : vector<16x64xf32>
    %cst_60 = arith.constant 5.000000e-01 : f32
    %244 = vector.broadcast %cst_60 : f32 to vector<16x64xf32>
    %245 = arith.mulf %244, %243 : vector<16x64xf32>
    %cst_61 = arith.constant 4.471500e-02 : f32
    %246 = vector.broadcast %cst_61 : f32 to vector<16x64xf32>
    %247 = arith.mulf %246, %243 : vector<16x64xf32>
    %248 = arith.mulf %247, %243 : vector<16x64xf32>
    %249 = arith.mulf %248, %243 : vector<16x64xf32>
    %250 = arith.addf %243, %249 : vector<16x64xf32>
    %cst_62 = arith.constant 0.797884583 : f32
    %251 = vector.broadcast %cst_62 : f32 to vector<16x64xf32>
    %252 = arith.mulf %251, %250 : vector<16x64xf32>
    %253 = math.tanh %252 : vector<16x64xf32>
    %cst_63 = arith.constant 1.000000e+00 : f32
    %254 = vector.broadcast %cst_63 : f32 to vector<16x64xf32>
    %255 = arith.addf %254, %253 : vector<16x64xf32>
    %256 = arith.mulf %245, %255 : vector<16x64xf32>
    %257 = arith.truncf %256 : vector<16x64xf32> to vector<16x64xbf16>
    %cst_64 = arith.constant dense<0.000000e+00> : vector<16x32xf32>
    %258 = tpu.matmul %257, %164, %cst_64 {dimension_numbers = #tpu.dot_dimension_numbers<[1], [0], [0], [1], [0, 0, 1, 1], [], []>} : vector<16x64xbf16>, vector<64x32xbf16>, vector<16x32xf32> -> vector<16x32xf32>
    %259 = vector.broadcast %170 : vector<1x32xf32> to vector<16x32xf32>
    %260 = arith.addf %258, %259 : vector<16x32xf32>
    %261 = arith.addf %239, %260 : vector<16x32xf32>
    %cst_65 = arith.constant dense<0.000000e+00> : vector<16xf32>
    %262 = vector.multi_reduction <add>, %261, %cst_65 [1] : vector<16x32xf32> to vector<16xf32>
    %263 = vector.shape_cast %262 : vector<16xf32> to vector<16x1xf32>
    %cst_66 = arith.constant 3.200000e+01 : f32
    %264 = vector.broadcast %cst_66 : f32 to vector<16x1xf32>
    %265 = arith.divf %263, %264 : vector<16x1xf32>
    %266 = vector.broadcast %265 : vector<16x1xf32> to vector<16x32xf32>
    %267 = arith.subf %261, %266 : vector<16x32xf32>
    %268 = arith.mulf %267, %267 : vector<16x32xf32>
    %cst_67 = arith.constant dense<0.000000e+00> : vector<16xf32>
    %269 = vector.multi_reduction <add>, %268, %cst_67 [1] : vector<16x32xf32> to vector<16xf32>
    %270 = vector.shape_cast %269 : vector<16xf32> to vector<16x1xf32>
    %cst_68 = arith.constant 3.200000e+01 : f32
    %271 = vector.broadcast %cst_68 : f32 to vector<16x1xf32>
    %272 = arith.divf %270, %271 : vector<16x1xf32>
    %273 = vector.broadcast %265 : vector<16x1xf32> to vector<16x32xf32>
    %274 = arith.subf %261, %273 : vector<16x32xf32>
    %cst_69 = arith.constant 9.99999996E-13 : f32
    %275 = vector.broadcast %cst_69 : f32 to vector<16x1xf32>
    %276 = arith.addf %272, %275 : vector<16x1xf32>
    %277 = math.rsqrt %276 : vector<16x1xf32>
    %278 = vector.broadcast %277 : vector<16x1xf32> to vector<16x32xf32>
    %279 = arith.mulf %274, %278 : vector<16x32xf32>
    %280 = vector.broadcast %171 : vector<1x32xf32> to vector<16x32xf32>
    %281 = arith.mulf %279, %280 : vector<16x32xf32>
    %282 = vector.broadcast %172 : vector<1x32xf32> to vector<16x32xf32>
    %283 = arith.addf %281, %282 : vector<16x32xf32>
    %c2_i32 = arith.constant 2 : i32
    %284 = arith.truncf %283 : vector<16x32xf32> to vector<16x32xbf16>
    %c0_70 = arith.constant 0 : index
    %c0_71 = arith.constant 0 : index
    %285 = vector.load %arg6[%c0_70, %c0_71] : memref<32x128xbf16, #tpu.memory_space<vmem>>, vector<32x128xbf16>
    %cst_72 = arith.constant dense<0.000000e+00> : vector<16x128xf32>
    %286 = tpu.matmul %284, %285, %cst_72 {dimension_numbers = #tpu.dot_dimension_numbers<[1], [0], [0], [1], [0, 0, 1, 1], [], []>} : vector<16x32xbf16>, vector<32x128xbf16>, vector<16x128xf32> -> vector<16x128xf32>
    %c2 = arith.constant 2 : index
    %c0_73 = arith.constant 0 : index
    %287 = vector.load %arg5[%c2, %c0_73] : memref<8x128xf32, #tpu.memory_space<vmem>>, vector<1x128xf32>
    %288 = vector.broadcast %287 : vector<1x128xf32> to vector<16x128xf32>
    %289 = arith.addf %286, %288 : vector<16x128xf32>
    %c0_74 = arith.constant 0 : index
    %c0_75 = arith.constant 0 : index
    %290 = vector.load %arg7[%c0_74, %c0_75] : memref<16x128xf32, #tpu.memory_space<vmem>>, vector<16x128xf32>
    tpu.vector_store %arg7[%c0_74, %c0_75], %289 {strides = array<i32>} : memref<16x128xf32, #tpu.memory_space<vmem>>, vector<16x128xf32>,
    return
  }
  func.func @transform_0(%arg0: i32) -> (i32, i32) {
    %c0_i32 = arith.constant 0 : i32
    %c0_i32_0 = arith.constant 0 : i32
    %c0_i32_1 = arith.constant 0 : i32
    return %c0_i32, %c0_i32_0 : i32, i32
  }
  func.func @transform_1(%arg0: i32) -> (i32, i32) {
    %c0_i32 = arith.constant 0 : i32
    %c0_i32_0 = arith.constant 0 : i32
    %c0_i32_1 = arith.constant 0 : i32
    return %c0_i32, %c0_i32_0 : i32, i32
  }
  func.func @transform_2(%arg0: i32) -> (i32, i32, i32) {
    %c0_i32 = arith.constant 0 : i32
    %c0_i32_0 = arith.constant 0 : i32
    %c0_i32_1 = arith.constant 0 : i32
    %c0_i32_2 = arith.constant 0 : i32
    return %c0_i32, %c0_i32_0, %c0_i32_1 : i32, i32, i32
  }
  func.func @transform_3(%arg0: i32) -> (i32, i32, i32) {
    %c0_i32 = arith.constant 0 : i32
    %c0_i32_0 = arith.constant 0 : i32
    %c0_i32_1 = arith.constant 0 : i32
    %c0_i32_2 = arith.constant 0 : i32
    return %c0_i32, %c0_i32_0, %c0_i32_1 : i32, i32, i32
  }
  func.func @transform_4(%arg0: i32) -> (i32, i32) {
    %c0_i32 = arith.constant 0 : i32
    %c0_i32_0 = arith.constant 0 : i32
    %c0_i32_1 = arith.constant 0 : i32
    return %c0_i32, %c0_i32_0 : i32, i32
  }
  func.func @transform_5(%arg0: i32) -> (i32, i32) {
    %c0_i32 = arith.constant 0 : i32
    %c0_i32_0 = arith.constant 0 : i32
    %c0_i32_1 = arith.constant 0 : i32
    return %c0_i32, %c0_i32_0 : i32, i32
  }
  func.func @transform_6(%arg0: i32) -> (i32, i32) {
    %c0_i32 = arith.constant 0 : i32
    %c0_i32_0 = arith.constant 0 : i32
    %c0_i32_1 = arith.constant 0 : i32
    return %c0_i32, %c0_i32_0 : i32, i32
  }
}

</mosaic_0001>

<llo_original>
// kernel: bert_classifier_forward.1
$region0: #{bert_classifier_forward.1}
  #allocation0 [shape = 'u32[]', space=smem, size = 0x4, offset = 0x4, fixed_abs, tag = 'smem constant byte address 0x4 - core index']
  #allocation1 [shape = 'u32[144,128]{1,0:T(1,128)}', space=vmem, size = 0x12000, scoped, tag = 'internal scratch']
  %s0 = inlined_call_operand.vmem [shape: f32[16,32], index: 0, kind: input, shape index: {}]
  %s1 = inlined_call_operand.vmem [shape: f32[16,16], index: 1, kind: input, shape index: {}]
  %s2 = inlined_call_operand.vmem [shape: bf16[2,64,224], index: 2, kind: input, shape index: {}]
  %s3 = inlined_call_operand.vmem [shape: f32[2,8,128], index: 3, kind: input, shape index: {}]
  %s4 = inlined_call_operand.vmem [shape: f32[8,128], index: 4, kind: input, shape index: {}]
  %s5 = inlined_call_operand.vmem [shape: bf16[32,128], index: 5, kind: input, shape index: {}]
  %s6 = inlined_call_operand.vmem [shape: f32[16,128], index: 6, kind: output, shape index: {}]
  %s7 = sld [smem:[#allocation0]]
  $region34: #{bert_classifier_forward.1} parent=0
    _
  %s9 = ssub.s32 1, %s7
  %s10 = scalar_select 0, %s9, %s7
  // Predicated region
  $region2: #{bert_classifier_forward.1} parent=0 // pred_check
    _
  $region3: #{bert_classifier_forward.1} parent=0 // pred_check_branch
    %12 = sbr.rel (0) target = $region5
  $region4: #{bert_classifier_forward.1} parent=0 // pred_region
    _
  $region5: #{bert_classifier_forward.1} parent=0 // pred_fallthru
    _
  // Predicated region
  $region6: #{bert_classifier_forward.1} parent=0 // pred_check
    _
  $region7: #{bert_classifier_forward.1} parent=0 // pred_check_branch
    %14 = sbr.rel (0) target = $region9
  $region8: #{bert_classifier_forward.1} parent=0 // pred_region
    _
  $region9: #{bert_classifier_forward.1} parent=0 // pred_fallthru
    _
  // Predicated region
  $region10: #{bert_classifier_forward.1} parent=0 // pred_check
    _
  $region11: #{bert_classifier_forward.1} parent=0 // pred_check_branch
    %16 = sbr.rel (0) target = $region13
  $region12: #{bert_classifier_forward.1} parent=0 // pred_region
    _
  $region13: #{bert_classifier_forward.1} parent=0 // pred_fallthru
    _
  // Predicated region
  $region14: #{bert_classifier_forward.1} parent=0 // pred_check
    _
  $region15: #{bert_classifier_forward.1} parent=0 // pred_check_branch
    %18 = sbr.rel (0) target = $region17
  $region16: #{bert_classifier_forward.1} parent=0 // pred_region
    _
  $region17: #{bert_classifier_forward.1} parent=0 // pred_fallthru
    _
  // Predicated region
  $region18: #{bert_classifier_forward.1} parent=0 // pred_check
    _
  $region19: #{bert_classifier_forward.1} parent=0 // pred_check_branch
    %20 = sbr.rel (0) target = $region21
  $region20: #{bert_classifier_forward.1} parent=0 // pred_region
    _
  $region21: #{bert_classifier_forward.1} parent=0 // pred_fallthru
    _
  // Predicated region
  $region22: #{bert_classifier_forward.1} parent=0 // pred_check
    _
  $region23: #{bert_classifier_forward.1} parent=0 // pred_check_branch
    %22 = sbr.rel (0) target = $region25
  $region24: #{bert_classifier_forward.1} parent=0 // pred_region
    _
  $region25: #{bert_classifier_forward.1} parent=0 // pred_fallthru
    _
  %v24 = vld [vmem:[%s0] sm:$0xff]
  %v25 = vld [vmem:[%s0 + $0x8] sm:$0xff]
  %v26 = vld [vmem:[%s4] sm:$0x1]
  %v27 = vld [vmem:[%s4 + $0x1] sm:$0x1]
  %vm28 = vcmask 261120
  %v29 = vsel %vm28, %v24, 0.0
  %30 = vadd.xlane.f32.xlu0 %v29
  %v31 = vpop.xlane.xlu0 %30
  %v32 = vsel %vm28, %v25, 0.0
  %33 = vadd.xlane.f32.xlu0 %v32
  %v34 = vpop.xlane.xlu0 %33
  %v35 = vrcp.pop 32.0
  %v36 = vmul.f32 %v31, %v35
  %v37 = vmul.f32 %v34, %v35
  %v38 = vsub.f32 %v24, %v36
  %v39 = vsub.f32 %v25, %v37
  %v40 = vmul.f32 %v38, %v38
  %v41 = vmul.f32 %v39, %v39
  %v42 = vsel %vm28, %v40, 0.0
  %43 = vadd.xlane.f32.xlu0 %v42
  %v44 = vpop.xlane.xlu0 %43
  %v45 = vsel %vm28, %v41, 0.0
  %46 = vadd.xlane.f32.xlu0 %v45
  %v47 = vpop.xlane.xlu0 %46
  %v48 = vmul.f32 %v44, %v35
  %v49 = vmul.f32 %v47, %v35
  %v50 = vadd.f32 %v48, 1e-12
  %v51 = vadd.f32 %v49, 1e-12
  %v52 = vrsqrt.pop %v50
  %v53 = vrsqrt.pop %v51
  %v54 = vmul.f32 %v38, %v52
  %v55 = vmul.f32 %v39, %v53
  %v56 = vlaneseq
  %v57 = vshrl.u32 %v56, 7
  %v58 = vsub.s32 0, %v57
  %v59 = vrot.slane %v26, %v58
  %v60 = vmul.f32 %v54, %v59
  %v61 = vmul.f32 %v55, %v59
  %v62 = vlaneseq
  %v63 = vshrl.u32 %v62, 7
  %v64 = vsub.s32 0, %v63
  %v65 = vrot.slane %v27, %v64
  %v66 = vadd.f32 %v60, %v65
  %v67 = vadd.f32 %v61, %v65
  %v68 = vld [vmem:[%s1] sm:$0xff]
  %v69 = vld [vmem:[%s1 + $0x8] sm:$0xff]
  %v70 = vld [vmem:[%s2] sm:$0xff]
  %v71 = vld [vmem:[%s2 + $0x8] sm:$0xff]
  %v72 = vld [vmem:[%s2 + $0x10] sm:$0xff]
  %v73 = vld [vmem:[%s2 + $0x18] sm:$0xff]
  %v74 = vld [vmem:[%s2 + $0x20] sm:$0xff]
  %v75 = vld [vmem:[%s2 + $0x28] sm:$0xff]
  %v76 = vld [vmem:[%s2 + $0x30] sm:$0xff]
  %v77 = vld [vmem:[%s2 + $0x38] sm:$0xff]
  %v78 = vld [vmem:[%s3] sm:$0xff]
  %v79 = vpack.c.bf16 %v67, %v66
  %v80 = vlaneseq
  %v81 = vshrl.u32 %v80, 7
  %v82 = vsub.s32 0, %v81
  %v83 = vrot.slane %v78, %v82
  %v88 = vunpack.c.l.b16 %v70
  %v89 = vunpack.c.l.b16 %v71
  %v90 = vunpack.c.l.b16 %v72
  %v91 = vunpack.c.l.b16 %v73
  %v92 = vpack.c.b16 %v89, %v88
  %v93 = vpack.c.b16 %v91, %v90
  %v97 = vsel %vm28, %v79, 0
  %99 = vmatprep.subr.bf16.mxu0 0
  %100 = vmatpush1.bf16.msra.mxu0 %v92
  %101 = vmatprep.subr.bf16.mxu0 0
  %102 = vmatpush1.bf16.msra.mxu0 %v93
  %103 = vmatprep.subr.bf16.mxu0 0
  %104 = vmatpush1.bf16.msra.mxu0 0
  %105 = vmatprep.subr.bf16.mxu0 0
  %106 = vmatpush1.bf16.msra.mxu0 0
  %107 = vmatprep.subr.bf16.mxu0 0
  %108 = vmatpush1.bf16.msra.mxu0 0
  %109 = vmatprep.subr.bf16.mxu0 0
  %110 = vmatpush1.bf16.msra.mxu0 0
  %111 = vmatprep.subr.bf16.mxu0 0
  %112 = vmatpush1.bf16.msra.mxu0 0
  %113 = vmatprep.subr.bf16.mxu0 0
  %114 = vmatpush1.bf16.msra.mxu0 0
  %115 = vmatprep.subr.bf16.mxu0 0
  %116 = vmatpush1.bf16.msra.mxu0 0
  %117 = vmatprep.subr.bf16.mxu0 0
  %118 = vmatpush1.bf16.msra.mxu0 0
  %119 = vmatprep.subr.bf16.mxu0 0
  %120 = vmatpush1.bf16.msra.mxu0 0
  %121 = vmatprep.subr.bf16.mxu0 0
  %122 = vmatpush1.bf16.msra.mxu0 0
  %123 = vmatprep.subr.bf16.mxu0 0
  %124 = vmatpush1.bf16.msra.mxu0 0
  %125 = vmatprep.subr.bf16.mxu0 0
  %126 = vmatpush1.bf16.msra.mxu0 0
  %127 = vmatprep.subr.bf16.mxu0 0
  %128 = vmatpush1.bf16.msra.mxu0 0
  %129 = vmatprep.subr.bf16.mxu0 0
  %130 = vmatpush1.bf16.msra.mxu0 0
  %131 = vmatprep.mubr.bf16.mxu0 0
  %132 = vmatmul.mubr.bf16.gmra.mrb[0].mxu0 %v97
  %v133 = vpop.f32.mrb[0].mxu0
  %v134 = vadd.f32 %v83, %v133
  %v135 = vpop.f32.mrb[0].mxu0
  %v136 = vpop.f32.mrb[0].mxu0
  %v137 = vadd.f32 %v83, %v136
  %v138 = vpop.f32.mrb[0].mxu0
  %139 = vdwg.mxu0
  %v140 = vpack.c.bf16 %v137, %v134
  %142 = vrot.lane.b32.xlu0 %v140, 96
  %v143 = vpop.permute.xlu0 %142
  %vm144 = vcmask 130048
  %v146 = vsel %vm144, %v140, 0
  %v149 = vsel %vm144, %v143, 0
  %151 = vmatprep.subr.bf16.mxu0 0
  %152 = vmatpush1.bf16.xpose.msra.mxu0 %v149
  %153 = vmatprep.subr.bf16.mxu0 0
  %154 = vmatpush1.bf16.xpose.msra.mxu0 0
  %155 = vmatprep.subr.bf16.mxu0 0
  %156 = vmatpush1.bf16.xpose.msra.mxu0 0
  %157 = vmatprep.subr.bf16.mxu0 0
  %158 = vmatpush1.bf16.xpose.msra.mxu0 0
  %159 = vmatprep.subr.bf16.mxu0 0
  %160 = vmatpush1.bf16.xpose.msra.mxu0 0
  %161 = vmatprep.subr.bf16.mxu0 0
  %162 = vmatpush1.bf16.xpose.msra.mxu0 0
  %163 = vmatprep.subr.bf16.mxu0 0
  %164 = vmatpush1.bf16.xpose.msra.mxu0 0
  %165 = vmatprep.subr.bf16.mxu0 0
  %166 = vmatpush1.bf16.xpose.msra.mxu0 0
  %167 = vmatprep.subr.bf16.mxu0 0
  %168 = vmatpush1.bf16.xpose.msra.mxu0 0
  %169 = vmatprep.subr.bf16.mxu0 0
  %170 = vmatpush1.bf16.xpose.msra.mxu0 0
  %171 = vmatprep.subr.bf16.mxu0 0
  %172 = vmatpush1.bf16.xpose.msra.mxu0 0
  %173 = vmatprep.subr.bf16.mxu0 0
  %174 = vmatpush1.bf16.xpose.msra.mxu0 0
  %175 = vmatprep.subr.bf16.mxu0 0
  %176 = vmatpush1.bf16.xpose.msra.mxu0 0
  %177 = vmatprep.subr.bf16.mxu0 0
  %178 = vmatpush1.bf16.xpose.msra.mxu0 0
  %179 = vmatprep.subr.bf16.mxu0 0
  %180 = vmatpush1.bf16.xpose.msra.mxu0 0
  %181 = vmatprep.subr.bf16.mxu0 0
  %182 = vmatpush1.bf16.xpose.msra.mxu0 0
  %183 = vmatprep.mubr.bf16.mxu0 0
  %184 = vmatmul.mubr.bf16.gmra.mrb[0].mxu0 %v146
  %v185 = vpop.f32.mrb[0].mxu0
  %v186 = vadd.f32 %v68, %v185
  %v187 = vpop.f32.mrb[0].mxu0
  %v188 = vpop.f32.mrb[0].mxu0
  %v189 = vadd.f32 %v69, %v188
  %v190 = vpop.f32.mrb[0].mxu0
  %191 = vdwg.mxu0
  %v192 = vsel %vm144, %v186, -inf
  %193 = vmax.xlane.f32.xlu0 %v192
  %v194 = vpop.xlane.xlu0 %193
  %v195 = vsel %vm144, %v189, -inf
  %196 = vmax.xlane.f32.xlu0 %v195
  %v197 = vpop.xlane.xlu0 %196
  %v198 = vsub.f32 %v186, %v194
  %v199 = vsub.f32 %v189, %v197
  %v200 = vmul.f32 %v198, 1.442695
  %v201 = vpow.pop %v200
  %v202 = vmul.f32 %v199, 1.442695
  %v203 = vpow.pop %v202
  %v204 = vsel %vm144, %v201, 0.0
  %205 = vadd.xlane.f32.xlu0 %v204
  %v206 = vpop.xlane.xlu0 %205
  %v207 = vsel %vm144, %v203, 0.0
  %208 = vadd.xlane.f32.xlu0 %v207
  %v209 = vpop.xlane.xlu0 %208
  %v210 = vrcp.pop %v206
  %v211 = vrcp.pop %v209
  %v212 = vmul.f32 %v201, %v210
  %v213 = vmul.f32 %v203, %v211
  %v214 = vpack.c.bf16 %v213, %v212
  %215 = vrot.lane.b32.xlu0 %v140, 64
  %v216 = vpop.permute.xlu0 %215
  %v219 = vsel %vm144, %v214, 0
  %221 = vmatprep.subr.bf16.mxu0 0
  %222 = vmatpush1.bf16.msra.mxu0 %v216
  %223 = vmatprep.subr.bf16.mxu0 0
  %224 = vmatpush1.bf16.msra.mxu0 0
  %225 = vmatprep.subr.bf16.mxu0 0
  %226 = vmatpush1.bf16.msra.mxu0 0
  %227 = vmatprep.subr.bf16.mxu0 0
  %228 = vmatpush1.bf16.msra.mxu0 0
  %229 = vmatprep.subr.bf16.mxu0 0
  %230 = vmatpush1.bf16.msra.mxu0 0
  %231 = vmatprep.subr.bf16.mxu0 0
  %232 = vmatpush1.bf16.msra.mxu0 0
  %233 = vmatprep.subr.bf16.mxu0 0
  %234 = vmatpush1.bf16.msra.mxu0 0
  %235 = vmatprep.subr.bf16.mxu0 0
  %236 = vmatpush1.bf16.msra.mxu0 0
  %237 = vmatprep.subr.bf16.mxu0 0
  %238 = vmatpush1.bf16.msra.mxu0 0
  %239 = vmatprep.subr.bf16.mxu0 0
  %240 = vmatpush1.bf16.msra.mxu0 0
  %241 = vmatprep.subr.bf16.mxu0 0
  %242 = vmatpush1.bf16.msra.mxu0 0
  %243 = vmatprep.subr.bf16.mxu0 0
  %244 = vmatpush1.bf16.msra.mxu0 0
  %245 = vmatprep.subr.bf16.mxu0 0
  %246 = vmatpush1.bf16.msra.mxu0 0
  %247 = vmatprep.subr.bf16.mxu0 0
  %248 = vmatpush1.bf16.msra.mxu0 0
  %249 = vmatprep.subr.bf16.mxu0 0
  %250 = vmatpush1.bf16.msra.mxu0 0
  %251 = vmatprep.subr.bf16.mxu0 0
  %252 = vmatpush1.bf16.msra.mxu0 0
  %253 = vmatprep.mubr.bf16.mxu0 0
  %254 = vmatmul.mubr.bf16.gmra.mrb[0].mxu0 %v219
  %v255 = vpop.f32.mrb[0].mxu0
  %v256 = vadd.f32 0.0, %v255
  %v257 = vpop.f32.mrb[0].mxu0
  %v258 = vpop.f32.mrb[0].mxu0
  %v259 = vadd.f32 0.0, %v258
  %v260 = vpop.f32.mrb[0].mxu0
  %261 = vdwg.mxu0
  %262 = vrot.lane.b32.xlu0 %v140, 112
  %v263 = vpop.permute.xlu0 %262
  %264 = vrot.lane.b32.xlu0 %v140, 80
  %v265 = vpop.permute.xlu0 %264
  %v267 = vsel %vm144, %v263, 0
  %v270 = vsel %vm144, %v265, 0
  %272 = vmatprep.subr.bf16.mxu0 0
  %273 = vmatpush1.bf16.xpose.msra.mxu0 %v270
  %274 = vmatprep.subr.bf16.mxu0 0
  %275 = vmatpush1.bf16.xpose.msra.mxu0 0
  %276 = vmatprep.subr.bf16.mxu0 0
  %277 = vmatpush1.bf16.xpose.msra.mxu0 0
  %278 = vmatprep.subr.bf16.mxu0 0
  %279 = vmatpush1.bf16.xpose.msra.mxu0 0
  %280 = vmatprep.subr.bf16.mxu0 0
  %281 = vmatpush1.bf16.xpose.msra.mxu0 0
  %282 = vmatprep.subr.bf16.mxu0 0
  %283 = vmatpush1.bf16.xpose.msra.mxu0 0
  %284 = vmatprep.subr.bf16.mxu0 0
  %285 = vmatpush1.bf16.xpose.msra.mxu0 0
  %286 = vmatprep.subr.bf16.mxu0 0
  %287 = vmatpush1.bf16.xpose.msra.mxu0 0
  %288 = vmatprep.subr.bf16.mxu0 0
  %289 = vmatpush1.bf16.xpose.msra.mxu0 0
  %290 = vmatprep.subr.bf16.mxu0 0
  %291 = vmatpush1.bf16.xpose.msra.mxu0 0
  %292 = vmatprep.subr.bf16.mxu0 0
  %293 = vmatpush1.bf16.xpose.msra.mxu0 0
  %294 = vmatprep.subr.bf16.mxu0 0
  %295 = vmatpush1.bf16.xpose.msra.mxu0 0
  %296 = vmatprep.subr.bf16.mxu0 0
  %297 = vmatpush1.bf16.xpose.msra.mxu0 0
  %298 = vmatprep.subr.bf16.mxu0 0
  %299 = vmatpush1.bf16.xpose.msra.mxu0 0
  %300 = vmatprep.subr.bf16.mxu0 0
  %301 = vmatpush1.bf16.xpose.msra.mxu0 0
  %302 = vmatprep.subr.bf16.mxu0 0
  %303 = vmatpush1.bf16.xpose.msra.mxu0 0
  %304 = vmatprep.mubr.bf16.mxu0 0
  %305 = vmatmul.mubr.bf16.gmra.mrb[0].mxu0 %v267
  %v306 = vpop.f32.mrb[0].mxu0
  %v307 = vadd.f32 %v68, %v306
  %v308 = vpop.f32.mrb[0].mxu0
  %v309 = vpop.f32.mrb[0].mxu0
  %v310 = vadd.f32 %v69, %v309
  %v311 = vpop.f32.mrb[0].mxu0
  %312 = vdwg.mxu0
  %v313 = vsel %vm144, %v307, -inf
  %314 = vmax.xlane.f32.xlu0 %v313
  %v315 = vpop.xlane.xlu0 %314
  %v316 = vsel %vm144, %v310, -inf
  %317 = vmax.xlane.f32.xlu0 %v316
  %v318 = vpop.xlane.xlu0 %317
  %v319 = vsub.f32 %v307, %v315
  %v320 = vsub.f32 %v310, %v318
  %v321 = vmul.f32 %v319, 1.442695
  %v322 = vpow.pop %v321
  %v323 = vmul.f32 %v320, 1.442695
  %v324 = vpow.pop %v323
  %v325 = vsel %vm144, %v322, 0.0
  %326 = vadd.xlane.f32.xlu0 %v325
  %v327 = vpop.xlane.xlu0 %326
  %v328 = vsel %vm144, %v324, 0.0
  %329 = vadd.xlane.f32.xlu0 %v328
  %v330 = vpop.xlane.xlu0 %329
  %v331 = vrcp.pop %v327
  %v332 = vrcp.pop %v330
  %v333 = vmul.f32 %v322, %v331
  %v334 = vmul.f32 %v324, %v332
  %v335 = vpack.c.bf16 %v334, %v333
  %336 = vrot.lane.b32.xlu0 %v140, 48
  %v337 = vpop.permute.xlu0 %336
  %v340 = vsel %vm144, %v335, 0
  %342 = vmatprep.subr.bf16.mxu0 0
  %343 = vmatpush1.bf16.msra.mxu0 %v337
  %344 = vmatprep.subr.bf16.mxu0 0
  %345 = vmatpush1.bf16.msra.mxu0 0
  %346 = vmatprep.subr.bf16.mxu0 0
  %347 = vmatpush1.bf16.msra.mxu0 0
  %348 = vmatprep.subr.bf16.mxu0 0
  %349 = vmatpush1.bf16.msra.mxu0 0
  %350 = vmatprep.subr.bf16.mxu0 0
  %351 = vmatpush1.bf16.msra.mxu0 0
  %352 = vmatprep.subr.bf16.mxu0 0
  %353 = vmatpush1.bf16.msra.mxu0 0
  %354 = vmatprep.subr.bf16.mxu0 0
  %355 = vmatpush1.bf16.msra.mxu0 0
  %356 = vmatprep.subr.bf16.mxu0 0
  %357 = vmatpush1.bf16.msra.mxu0 0
  %358 = vmatprep.subr.bf16.mxu0 0
  %359 = vmatpush1.bf16.msra.mxu0 0
  %360 = vmatprep.subr.bf16.mxu0 0
  %361 = vmatpush1.bf16.msra.mxu0 0
  %362 = vmatprep.subr.bf16.mxu0 0
  %363 = vmatpush1.bf16.msra.mxu0 0
  %364 = vmatprep.subr.bf16.mxu0 0
  %365 = vmatpush1.bf16.msra.mxu0 0
  %366 = vmatprep.subr.bf16.mxu0 0
  %367 = vmatpush1.bf16.msra.mxu0 0
  %368 = vmatprep.subr.bf16.mxu0 0
  %369 = vmatpush1.bf16.msra.mxu0 0
  %370 = vmatprep.subr.bf16.mxu0 0
  %371 = vmatpush1.bf16.msra.mxu0 0
  %372 = vmatprep.subr.bf16.mxu0 0
  %373 = vmatpush1.bf16.msra.mxu0 0
  %374 = vmatprep.mubr.bf16.mxu0 0
  %375 = vmatmul.mubr.bf16.gmra.mrb[0].mxu0 %v340
  %v376 = vpop.f32.mrb[0].mxu0
  %v377 = vadd.f32 0.0, %v376
  %v378 = vpop.f32.mrb[0].mxu0
  %v379 = vpop.f32.mrb[0].mxu0
  %v380 = vadd.f32 0.0, %v379
  %v381 = vpop.f32.mrb[0].mxu0
  %382 = vdwg.mxu0
  %385 = vrot.lane.b32.xlu0 %v377, 16
  %v386 = vpop.permute.xlu0 %385
  %387 = vrot.lane.b32.xlu0 %v380, 16
  %v388 = vpop.permute.xlu0 %387
  %v391 = vsel %vm144, %v256, %v386
  %v392 = vsel %vm144, %v259, %v388
  %v393 = vpack.c.bf16 %v392, %v391
  %v394 = vlaneseq
  %v395 = vshrl.u32 %v394, 7
  %v396 = vsub.s32 1, %v395
  %v397 = vrot.slane %v78, %v396
  %398 = vrot.lane.b32.xlu0 %v92, 32
  %v399 = vpop.permute.xlu0 %398
  %400 = vrot.lane.b32.xlu0 %v93, 32
  %v401 = vpop.permute.xlu0 %400
  %v405 = vsel %vm28, %v393, 0
  %407 = vmatprep.subr.bf16.mxu0 0
  %408 = vmatpush1.bf16.msra.mxu0 %v399
  %409 = vmatprep.subr.bf16.mxu0 0
  %410 = vmatpush1.bf16.msra.mxu0 %v401
  %411 = vmatprep.subr.bf16.mxu0 0
  %412 = vmatpush1.bf16.msra.mxu0 0
  %413 = vmatprep.subr.bf16.mxu0 0
  %414 = vmatpush1.bf16.msra.mxu0 0
  %415 = vmatprep.subr.bf16.mxu0 0
  %416 = vmatpush1.bf16.msra.mxu0 0
  %417 = vmatprep.subr.bf16.mxu0 0
  %418 = vmatpush1.bf16.msra.mxu0 0
  %419 = vmatprep.subr.bf16.mxu0 0
  %420 = vmatpush1.bf16.msra.mxu0 0
  %421 = vmatprep.subr.bf16.mxu0 0
  %422 = vmatpush1.bf16.msra.mxu0 0
  %423 = vmatprep.subr.bf16.mxu0 0
  %424 = vmatpush1.bf16.msra.mxu0 0
  %425 = vmatprep.subr.bf16.mxu0 0
  %426 = vmatpush1.bf16.msra.mxu0 0
  %427 = vmatprep.subr.bf16.mxu0 0
  %428 = vmatpush1.bf16.msra.mxu0 0
  %429 = vmatprep.subr.bf16.mxu0 0
  %430 = vmatpush1.bf16.msra.mxu0 0
  %431 = vmatprep.subr.bf16.mxu0 0
  %432 = vmatpush1.bf16.msra.mxu0 0
  %433 = vmatprep.subr.bf16.mxu0 0
  %434 = vmatpush1.bf16.msra.mxu0 0
  %435 = vmatprep.subr.bf16.mxu0 0
  %436 = vmatpush1.bf16.msra.mxu0 0
  %437 = vmatprep.subr.bf16.mxu0 0
  %438 = vmatpush1.bf16.msra.mxu0 0
  %439 = vmatprep.mubr.bf16.mxu0 0
  %440 = vmatmul.mubr.bf16.gmra.mrb[0].mxu0 %v405
  %v441 = vpop.f32.mrb[0].mxu0
  %v442 = vadd.f32 %v397, %v441
  %v443 = vpop.f32.mrb[0].mxu0
  %v444 = vpop.f32.mrb[0].mxu0
  %v445 = vadd.f32 %v397, %v444
  %v446 = vpop.f32.mrb[0].mxu0
  %447 = vdwg.mxu0
  %v448 = vadd.f32 %v66, %v442
  %v449 = vadd.f32 %v67, %v445
  %v450 = vsel %vm28, %v448, 0.0
  %451 = vadd.xlane.f32.xlu0 %v450
  %v452 = vpop.xlane.xlu0 %451
  %v453 = vsel %vm28, %v449, 0.0
  %454 = vadd.xlane.f32.xlu0 %v453
  %v455 = vpop.xlane.xlu0 %454
  %v456 = vmul.f32 %v452, %v35
  %v457 = vmul.f32 %v455, %v35
  %v458 = vsub.f32 %v448, %v456
  %v459 = vsub.f32 %v449, %v457
  %v460 = vmul.f32 %v458, %v458
  %v461 = vmul.f32 %v459, %v459
  %v462 = vsel %vm28, %v460, 0.0
  %463 = vadd.xlane.f32.xlu0 %v462
  %v464 = vpop.xlane.xlu0 %463
  %v465 = vsel %vm28, %v461, 0.0
  %466 = vadd.xlane.f32.xlu0 %v465
  %v467 = vpop.xlane.xlu0 %466
  %v468 = vmul.f32 %v464, %v35
  %v469 = vmul.f32 %v467, %v35
  %v470 = vadd.f32 %v468, 1e-12
  %v471 = vadd.f32 %v469, 1e-12
  %v472 = vrsqrt.pop %v470
  %v473 = vrsqrt.pop %v471
  %v474 = vmul.f32 %v458, %v472
  %v475 = vmul.f32 %v459, %v473
  %v476 = vlaneseq
  %v477 = vshrl.u32 %v476, 7
  %v478 = vsub.s32 2, %v477
  %v479 = vrot.slane %v78, %v478
  %v480 = vmul.f32 %v474, %v479
  %v481 = vmul.f32 %v475, %v479
  %v482 = vlaneseq
  %v483 = vshrl.u32 %v482, 7
  %v484 = vsub.s32 3, %v483
  %v485 = vrot.slane %v78, %v484
  %v486 = vadd.f32 %v480, %v485
  %v487 = vadd.f32 %v481, %v485
  %v488 = vpack.c.bf16 %v487, %v486
  %v489 = vlaneseq
  %v490 = vshrl.u32 %v489, 7
  %v491 = vsub.s32 4, %v490
  %v492 = vrot.slane %v78, %v491
  %v493 = vunpack.c.h.b16 %v70
  %v494 = vunpack.c.h.b16 %v71
  %v495 = vunpack.c.h.b16 %v72
  %v496 = vunpack.c.h.b16 %v73
  %v497 = vpack.c.b16 %v494, %v493
  %v498 = vpack.c.b16 %v496, %v495
  %v502 = vsel %vm28, %v488, 0
  %504 = vmatprep.subr.bf16.mxu0 0
  %505 = vmatpush1.bf16.msra.mxu0 %v497
  %506 = vmatprep.subr.bf16.mxu0 0
  %507 = vmatpush1.bf16.msra.mxu0 %v498
  %508 = vmatprep.subr.bf16.mxu0 0
  %509 = vmatpush1.bf16.msra.mxu0 0
  %510 = vmatprep.subr.bf16.mxu0 0
  %511 = vmatpush1.bf16.msra.mxu0 0
  %512 = vmatprep.subr.bf16.mxu0 0
  %513 = vmatpush1.bf16.msra.mxu0 0
  %514 = vmatprep.subr.bf16.mxu0 0
  %515 = vmatpush1.bf16.msra.mxu0 0
  %516 = vmatprep.subr.bf16.mxu0 0
  %517 = vmatpush1.bf16.msra.mxu0 0
  %518 = vmatprep.subr.bf16.mxu0 0
  %519 = vmatpush1.bf16.msra.mxu0 0
  %520 = vmatprep.subr.bf16.mxu0 0
  %521 = vmatpush1.bf16.msra.mxu0 0
  %522 = vmatprep.subr.bf16.mxu0 0
  %523 = vmatpush1.bf16.msra.mxu0 0
  %524 = vmatprep.subr.bf16.mxu0 0
  %525 = vmatpush1.bf16.msra.mxu0 0
  %526 = vmatprep.subr.bf16.mxu0 0
  %527 = vmatpush1.bf16.msra.mxu0 0
  %528 = vmatprep.subr.bf16.mxu0 0
  %529 = vmatpush1.bf16.msra.mxu0 0
  %530 = vmatprep.subr.bf16.mxu0 0
  %531 = vmatpush1.bf16.msra.mxu0 0
  %532 = vmatprep.subr.bf16.mxu0 0
  %533 = vmatpush1.bf16.msra.mxu0 0
  %534 = vmatprep.subr.bf16.mxu0 0
  %535 = vmatpush1.bf16.msra.mxu0 0
  %536 = vmatprep.mubr.bf16.mxu0 0
  %537 = vmatmul.mubr.bf16.gmra.mrb[0].mxu0 %v502
  %v538 = vpop.f32.mrb[0].mxu0
  %v539 = vadd.f32 %v492, %v538
  %v540 = vpop.f32.mrb[0].mxu0
  %v541 = vpop.f32.mrb[0].mxu0
  %v542 = vadd.f32 %v492, %v541
  %v543 = vpop.f32.mrb[0].mxu0
  %544 = vdwg.mxu0
  %v545 = vmul.f32 %v539, 0.5
  %v546 = vmul.f32 %v542, 0.5
  %v547 = vmul.f32 %v539, 0.044715
  %v548 = vmul.f32 %v542, 0.044715
  %v549 = vmul.f32 %v547, %v539
  %v550 = vmul.f32 %v548, %v542
  %v551 = vmul.f32 %v549, %v539
  %v552 = vmul.f32 %v550, %v542
  %v553 = vadd.f32 %v539, %v551
  %v554 = vadd.f32 %v542, %v552
  %v555 = vmul.f32 %v553, 0.7978846
  %v556 = vmul.f32 %v554, 0.7978846
  %v557 = vtanh.pop %v555
  %v558 = vtanh.pop %v556
  %v559 = vadd.f32 %v557, 1.0
  %v560 = vadd.f32 %v558, 1.0
  %v561 = vmul.f32 %v545, %v559
  %v562 = vmul.f32 %v546, %v560
  %v563 = vpack.c.bf16 %v562, %v561
  %v564 = vlaneseq
  %v565 = vshrl.u32 %v564, 7
  %v566 = vsub.s32 5, %v565
  %v567 = vrot.slane %v78, %v566
  %v572 = vunpack.c.h.b16 %v74
  %v573 = vunpack.c.h.b16 %v75
  %v574 = vunpack.c.h.b16 %v76
  %v575 = vunpack.c.h.b16 %v77
  %v576 = vpack.c.b16 %v573, %v572
  %v577 = vpack.c.b16 %v575, %v574
  %578 = vrot.lane.b32.xlu0 %v497, 64
  %v579 = vpop.permute.xlu0 %578
  %580 = vrot.lane.b32.xlu0 %v498, 64
  %v581 = vpop.permute.xlu0 %580
  %582 = vrot.lane.b32.xlu0 %v576, 64
  %v583 = vpop.permute.xlu0 %582
  %584 = vrot.lane.b32.xlu0 %v577, 64
  %v585 = vpop.permute.xlu0 %584
  %vm590 = vcmask 523264
  %v592 = vsel %vm590, %v563, 0
  %594 = vmatprep.subr.bf16.mxu0 0
  %595 = vmatpush1.bf16.msra.mxu0 %v579
  %596 = vmatprep.subr.bf16.mxu0 0
  %597 = vmatpush1.bf16.msra.mxu0 %v581
  %598 = vmatprep.subr.bf16.mxu0 0
  %599 = vmatpush1.bf16.msra.mxu0 %v583
  %600 = vmatprep.subr.bf16.mxu0 0
  %601 = vmatpush1.bf16.msra.mxu0 %v585
  %602 = vmatprep.subr.bf16.mxu0 0
  %603 = vmatpush1.bf16.msra.mxu0 0
  %604 = vmatprep.subr.bf16.mxu0 0
  %605 = vmatpush1.bf16.msra.mxu0 0
  %606 = vmatprep.subr.bf16.mxu0 0
  %607 = vmatpush1.bf16.msra.mxu0 0
  %608 = vmatprep.subr.bf16.mxu0 0
  %609 = vmatpush1.bf16.msra.mxu0 0
  %610 = vmatprep.subr.bf16.mxu0 0
  %611 = vmatpush1.bf16.msra.mxu0 0
  %612 = vmatprep.subr.bf16.mxu0 0
  %613 = vmatpush1.bf16.msra.mxu0 0
  %614 = vmatprep.subr.bf16.mxu0 0
  %615 = vmatpush1.bf16.msra.mxu0 0
  %616 = vmatprep.subr.bf16.mxu0 0
  %617 = vmatpush1.bf16.msra.mxu0 0
  %618 = vmatprep.subr.bf16.mxu0 0
  %619 = vmatpush1.bf16.msra.mxu0 0
  %620 = vmatprep.subr.bf16.mxu0 0
  %621 = vmatpush1.bf16.msra.mxu0 0
  %622 = vmatprep.subr.bf16.mxu0 0
  %623 = vmatpush1.bf16.msra.mxu0 0
  %624 = vmatprep.subr.bf16.mxu0 0
  %625 = vmatpush1.bf16.msra.mxu0 0
  %626 = vmatprep.mubr.bf16.mxu0 0
  %627 = vmatmul.mubr.bf16.gmra.mrb[0].mxu0 %v592
  %v628 = vpop.f32.mrb[0].mxu0
  %v629 = vadd.f32 %v567, %v628
  %v630 = vpop.f32.mrb[0].mxu0
  %v631 = vpop.f32.mrb[0].mxu0
  %v632 = vadd.f32 %v567, %v631
  %v633 = vpop.f32.mrb[0].mxu0
  %634 = vdwg.mxu0
  %v635 = vadd.f32 %v486, %v629
  %v636 = vadd.f32 %v487, %v632
  %v637 = vsel %vm28, %v635, 0.0
  %638 = vadd.xlane.f32.xlu0 %v637
  %v639 = vpop.xlane.xlu0 %638
  %v640 = vsel %vm28, %v636, 0.0
  %641 = vadd.xlane.f32.xlu0 %v640
  %v642 = vpop.xlane.xlu0 %641
  %v643 = vmul.f32 %v639, %v35
  %v644 = vmul.f32 %v642, %v35
  %v645 = vsub.f32 %v635, %v643
  %v646 = vsub.f32 %v636, %v644
  %v647 = vmul.f32 %v645, %v645
  %v648 = vmul.f32 %v646, %v646
  %v649 = vsel %vm28, %v647, 0.0
  %650 = vadd.xlane.f32.xlu0 %v649
  %v651 = vpop.xlane.xlu0 %650
  %v652 = vsel %vm28, %v648, 0.0
  %653 = vadd.xlane.f32.xlu0 %v652
  %v654 = vpop.xlane.xlu0 %653
  %v655 = vmul.f32 %v651, %v35
  %v656 = vmul.f32 %v654, %v35
  %v657 = vadd.f32 %v655, 1e-12
  %v658 = vadd.f32 %v656, 1e-12
  %v659 = vrsqrt.pop %v657
  %v660 = vrsqrt.pop %v658
  %v661 = vmul.f32 %v645, %v659
  %v662 = vmul.f32 %v646, %v660
  %v663 = vlaneseq
  %v664 = vshrl.u32 %v663, 7
  %v665 = vsub.s32 6, %v664
  %v666 = vrot.slane %v78, %v665
  %v667 = vmul.f32 %v661, %v666
  %v668 = vmul.f32 %v662, %v666
  %v669 = vlaneseq
  %v670 = vshrl.u32 %v669, 7
  %v671 = vsub.s32 7, %v670
  %v672 = vrot.slane %v78, %v671
  %v673 = vadd.f32 %v667, %v672
  %v674 = vadd.f32 %v668, %v672
  %s675 = scalar_lea.vmem %s2, 64
  %v676 = vld [vmem:[%s675] sm:$0xff]
  %v677 = vld [vmem:[%s675 + $0x8] sm:$0xff]
  %v678 = vld [vmem:[%s675 + $0x10] sm:$0xff]
  %v679 = vld [vmem:[%s675 + $0x18] sm:$0xff]
  %v680 = vld [vmem:[%s675 + $0x20] sm:$0xff]
  %v681 = vld [vmem:[%s675 + $0x28] sm:$0xff]
  %v682 = vld [vmem:[%s675 + $0x30] sm:$0xff]
  %v683 = vld [vmem:[%s675 + $0x38] sm:$0xff]
  %s684 = scalar_lea.vmem %s3, 8
  %v685 = vld [vmem:[%s684] sm:$0xff]
  %v686 = vpack.c.bf16 %v674, %v673
  %v687 = vlaneseq
  %v688 = vshrl.u32 %v687, 7
  %v689 = vsub.s32 0, %v688
  %v690 = vrot.slane %v685, %v689
  %v695 = vunpack.c.l.b16 %v676
  %v696 = vunpack.c.l.b16 %v677
  %v697 = vunpack.c.l.b16 %v678
  %v698 = vunpack.c.l.b16 %v679
  %v699 = vpack.c.b16 %v696, %v695
  %v700 = vpack.c.b16 %v698, %v697
  %v704 = vsel %vm28, %v686, 0
  %706 = vmatprep.subr.bf16.mxu0 0
  %707 = vmatpush1.bf16.msra.mxu0 %v699
  %708 = vmatprep.subr.bf16.mxu0 0
  %709 = vmatpush1.bf16.msra.mxu0 %v700
  %710 = vmatprep.subr.bf16.mxu0 0
  %711 = vmatpush1.bf16.msra.mxu0 0
  %712 = vmatprep.subr.bf16.mxu0 0
  %713 = vmatpush1.bf16.msra.mxu0 0
  %714 = vmatprep.subr.bf16.mxu0 0
  %715 = vmatpush1.bf16.msra.mxu0 0
  %716 = vmatprep.subr.bf16.mxu0 0
  %717 = vmatpush1.bf16.msra.mxu0 0
  %718 = vmatprep.subr.bf16.mxu0 0
  %719 = vmatpush1.bf16.msra.mxu0 0
  %720 = vmatprep.subr.bf16.mxu0 0
  %721 = vmatpush1.bf16.msra.mxu0 0
  %722 = vmatprep.subr.bf16.mxu0 0
  %723 = vmatpush1.bf16.msra.mxu0 0
  %724 = vmatprep.subr.bf16.mxu0 0
  %725 = vmatpush1.bf16.msra.mxu0 0
  %726 = vmatprep.subr.bf16.mxu0 0
  %727 = vmatpush1.bf16.msra.mxu0 0
  %728 = vmatprep.subr.bf16.mxu0 0
  %729 = vmatpush1.bf16.msra.mxu0 0
  %730 = vmatprep.subr.bf16.mxu0 0
  %731 = vmatpush1.bf16.msra.mxu0 0
  %732 = vmatprep.subr.bf16.mxu0 0
  %733 = vmatpush1.bf16.msra.mxu0 0
  %734 = vmatprep.subr.bf16.mxu0 0
  %735 = vmatpush1.bf16.msra.mxu0 0
  %736 = vmatprep.subr.bf16.mxu0 0
  %737 = vmatpush1.bf16.msra.mxu0 0
  %738 = vmatprep.mubr.bf16.mxu0 0
  %739 = vmatmul.mubr.bf16.gmra.mrb[0].mxu0 %v704
  %v740 = vpop.f32.mrb[0].mxu0
  %v741 = vadd.f32 %v690, %v740
  %v742 = vpop.f32.mrb[0].mxu0
  %v743 = vpop.f32.mrb[0].mxu0
  %v744 = vadd.f32 %v690, %v743
  %v745 = vpop.f32.mrb[0].mxu0
  %746 = vdwg.mxu0
  %v747 = vpack.c.bf16 %v744, %v741
  %749 = vrot.lane.b32.xlu0 %v747, 96
  %v750 = vpop.permute.xlu0 %749
  %v752 = vsel %vm144, %v747, 0
  %v755 = vsel %vm144, %v750, 0
  %757 = vmatprep.subr.bf16.mxu0 0
  %758 = vmatpush1.bf16.xpose.msra.mxu0 %v755
  %759 = vmatprep.subr.bf16.mxu0 0
  %760 = vmatpush1.bf16.xpose.msra.mxu0 0
  %761 = vmatprep.subr.bf16.mxu0 0
  %762 = vmatpush1.bf16.xpose.msra.mxu0 0
  %763 = vmatprep.subr.bf16.mxu0 0
  %764 = vmatpush1.bf16.xpose.msra.mxu0 0
  %765 = vmatprep.subr.bf16.mxu0 0
  %766 = vmatpush1.bf16.xpose.msra.mxu0 0
  %767 = vmatprep.subr.bf16.mxu0 0
  %768 = vmatpush1.bf16.xpose.msra.mxu0 0
  %769 = vmatprep.subr.bf16.mxu0 0
  %770 = vmatpush1.bf16.xpose.msra.mxu0 0
  %771 = vmatprep.subr.bf16.mxu0 0
  %772 = vmatpush1.bf16.xpose.msra.mxu0 0
  %773 = vmatprep.subr.bf16.mxu0 0
  %774 = vmatpush1.bf16.xpose.msra.mxu0 0
  %775 = vmatprep.subr.bf16.mxu0 0
  %776 = vmatpush1.bf16.xpose.msra.mxu0 0
  %777 = vmatprep.subr.bf16.mxu0 0
  %778 = vmatpush1.bf16.xpose.msra.mxu0 0
  %779 = vmatprep.subr.bf16.mxu0 0
  %780 = vmatpush1.bf16.xpose.msra.mxu0 0
  %781 = vmatprep.subr.bf16.mxu0 0
  %782 = vmatpush1.bf16.xpose.msra.mxu0 0
  %783 = vmatprep.subr.bf16.mxu0 0
  %784 = vmatpush1.bf16.xpose.msra.mxu0 0
  %785 = vmatprep.subr.bf16.mxu0 0
  %786 = vmatpush1.bf16.xpose.msra.mxu0 0
  %787 = vmatprep.subr.bf16.mxu0 0
  %788 = vmatpush1.bf16.xpose.msra.mxu0 0
  %789 = vmatprep.mubr.bf16.mxu0 0
  %790 = vmatmul.mubr.bf16.gmra.mrb[0].mxu0 %v752
  %v791 = vpop.f32.mrb[0].mxu0
  %v792 = vadd.f32 %v68, %v791
  %v793 = vpop.f32.mrb[0].mxu0
  %v794 = vpop.f32.mrb[0].mxu0
  %v795 = vadd.f32 %v69, %v794
  %v796 = vpop.f32.mrb[0].mxu0
  %797 = vdwg.mxu0
  %v798 = vsel %vm144, %v792, -inf
  %799 = vmax.xlane.f32.xlu0 %v798
  %v800 = vpop.xlane.xlu0 %799
  %v801 = vsel %vm144, %v795, -inf
  %802 = vmax.xlane.f32.xlu0 %v801
  %v803 = vpop.xlane.xlu0 %802
  %v804 = vsub.f32 %v792, %v800
  %v805 = vsub.f32 %v795, %v803
  %v806 = vmul.f32 %v804, 1.442695
  %v807 = vpow.pop %v806
  %v808 = vmul.f32 %v805, 1.442695
  %v809 = vpow.pop %v808
  %v810 = vsel %vm144, %v807, 0.0
  %811 = vadd.xlane.f32.xlu0 %v810
  %v812 = vpop.xlane.xlu0 %811
  %v813 = vsel %vm144, %v809, 0.0
  %814 = vadd.xlane.f32.xlu0 %v813
  %v815 = vpop.xlane.xlu0 %814
  %v816 = vrcp.pop %v812
  %v817 = vrcp.pop %v815
  %v818 = vmul.f32 %v807, %v816
  %v819 = vmul.f32 %v809, %v817
  %v820 = vpack.c.bf16 %v819, %v818
  %821 = vrot.lane.b32.xlu0 %v747, 64
  %v822 = vpop.permute.xlu0 %821
  %v825 = vsel %vm144, %v820, 0
  %827 = vmatprep.subr.bf16.mxu0 0
  %828 = vmatpush1.bf16.msra.mxu0 %v822
  %829 = vmatprep.subr.bf16.mxu0 0
  %830 = vmatpush1.bf16.msra.mxu0 0
  %831 = vmatprep.subr.bf16.mxu0 0
  %832 = vmatpush1.bf16.msra.mxu0 0
  %833 = vmatprep.subr.bf16.mxu0 0
  %834 = vmatpush1.bf16.msra.mxu0 0
  %835 = vmatprep.subr.bf16.mxu0 0
  %836 = vmatpush1.bf16.msra.mxu0 0
  %837 = vmatprep.subr.bf16.mxu0 0
  %838 = vmatpush1.bf16.msra.mxu0 0
  %839 = vmatprep.subr.bf16.mxu0 0
  %840 = vmatpush1.bf16.msra.mxu0 0
  %841 = vmatprep.subr.bf16.mxu0 0
  %842 = vmatpush1.bf16.msra.mxu0 0
  %843 = vmatprep.subr.bf16.mxu0 0
  %844 = vmatpush1.bf16.msra.mxu0 0
  %845 = vmatprep.subr.bf16.mxu0 0
  %846 = vmatpush1.bf16.msra.mxu0 0
  %847 = vmatprep.subr.bf16.mxu0 0
  %848 = vmatpush1.bf16.msra.mxu0 0
  %849 = vmatprep.subr.bf16.mxu0 0
  %850 = vmatpush1.bf16.msra.mxu0 0
  %851 = vmatprep.subr.bf16.mxu0 0
  %852 = vmatpush1.bf16.msra.mxu0 0
  %853 = vmatprep.subr.bf16.mxu0 0
  %854 = vmatpush1.bf16.msra.mxu0 0
  %855 = vmatprep.subr.bf16.mxu0 0
  %856 = vmatpush1.bf16.msra.mxu0 0
  %857 = vmatprep.subr.bf16.mxu0 0
  %858 = vmatpush1.bf16.msra.mxu0 0
  %859 = vmatprep.mubr.bf16.mxu0 0
  %860 = vmatmul.mubr.bf16.gmra.mrb[0].mxu0 %v825
  %v861 = vpop.f32.mrb[0].mxu0
  %v862 = vadd.f32 0.0, %v861
  %v863 = vpop.f32.mrb[0].mxu0
  %v864 = vpop.f32.mrb[0].mxu0
  %v865 = vadd.f32 0.0, %v864
  %v866 = vpop.f32.mrb[0].mxu0
  %867 = vdwg.mxu0
  %868 = vrot.lane.b32.xlu0 %v747, 112
  %v869 = vpop.permute.xlu0 %868
  %870 = vrot.lane.b32.xlu0 %v747, 80
  %v871 = vpop.permute.xlu0 %870
  %v873 = vsel %vm144, %v869, 0
  %v876 = vsel %vm144, %v871, 0
  %878 = vmatprep.subr.bf16.mxu0 0
  %879 = vmatpush1.bf16.xpose.msra.mxu0 %v876
  %880 = vmatprep.subr.bf16.mxu0 0
  %881 = vmatpush1.bf16.xpose.msra.mxu0 0
  %882 = vmatprep.subr.bf16.mxu0 0
  %883 = vmatpush1.bf16.xpose.msra.mxu0 0
  %884 = vmatprep.subr.bf16.mxu0 0
  %885 = vmatpush1.bf16.xpose.msra.mxu0 0
  %886 = vmatprep.subr.bf16.mxu0 0
  %887 = vmatpush1.bf16.xpose.msra.mxu0 0
  %888 = vmatprep.subr.bf16.mxu0 0
  %889 = vmatpush1.bf16.xpose.msra.mxu0 0
  %890 = vmatprep.subr.bf16.mxu0 0
  %891 = vmatpush1.bf16.xpose.msra.mxu0 0
  %892 = vmatprep.subr.bf16.mxu0 0
  %893 = vmatpush1.bf16.xpose.msra.mxu0 0
  %894 = vmatprep.subr.bf16.mxu0 0
  %895 = vmatpush1.bf16.xpose.msra.mxu0 0
  %896 = vmatprep.subr.bf16.mxu0 0
  %897 = vmatpush1.bf16.xpose.msra.mxu0 0
  %898 = vmatprep.subr.bf16.mxu0 0
  %899 = vmatpush1.bf16.xpose.msra.mxu0 0
  %900 = vmatprep.subr.bf16.mxu0 0
  %901 = vmatpush1.bf16.xpose.msra.mxu0 0
  %902 = vmatprep.subr.bf16.mxu0 0
  %903 = vmatpush1.bf16.xpose.msra.mxu0 0
  %904 = vmatprep.subr.bf16.mxu0 0
  %905 = vmatpush1.bf16.xpose.msra.mxu0 0
  %906 = vmatprep.subr.bf16.mxu0 0
  %907 = vmatpush1.bf16.xpose.msra.mxu0 0
  %908 = vmatprep.subr.bf16.mxu0 0
  %909 = vmatpush1.bf16.xpose.msra.mxu0 0
  %910 = vmatprep.mubr.bf16.mxu0 0
  %911 = vmatmul.mubr.bf16.gmra.mrb[0].mxu0 %v873
  %v912 = vpop.f32.mrb[0].mxu0
  %v913 = vadd.f32 %v68, %v912
  %v914 = vpop.f32.mrb[0].mxu0
  %v915 = vpop.f32.mrb[0].mxu0
  %v916 = vadd.f32 %v69, %v915
  %v917 = vpop.f32.mrb[0].mxu0
  %918 = vdwg.mxu0
  %v919 = vsel %vm144, %v913, -inf
  %920 = vmax.xlane.f32.xlu0 %v919
  %v921 = vpop.xlane.xlu0 %920
  %v922 = vsel %vm144, %v916, -inf
  %923 = vmax.xlane.f32.xlu0 %v922
  %v924 = vpop.xlane.xlu0 %923
  %v925 = vsub.f32 %v913, %v921
  %v926 = vsub.f32 %v916, %v924
  %v927 = vmul.f32 %v925, 1.442695
  %v928 = vpow.pop %v927
  %v929 = vmul.f32 %v926, 1.442695
  %v930 = vpow.pop %v929
  %v931 = vsel %vm144, %v928, 0.0
  %932 = vadd.xlane.f32.xlu0 %v931
  %v933 = vpop.xlane.xlu0 %932
  %v934 = vsel %vm144, %v930, 0.0
  %935 = vadd.xlane.f32.xlu0 %v934
  %v936 = vpop.xlane.xlu0 %935
  %v937 = vrcp.pop %v933
  %v938 = vrcp.pop %v936
  %v939 = vmul.f32 %v928, %v937
  %v940 = vmul.f32 %v930, %v938
  %v941 = vpack.c.bf16 %v940, %v939
  %942 = vrot.lane.b32.xlu0 %v747, 48
  %v943 = vpop.permute.xlu0 %942
  %v946 = vsel %vm144, %v941, 0
  %948 = vmatprep.subr.bf16.mxu0 0
  %949 = vmatpush1.bf16.msra.mxu0 %v943
  %950 = vmatprep.subr.bf16.mxu0 0
  %951 = vmatpush1.bf16.msra.mxu0 0
  %952 = vmatprep.subr.bf16.mxu0 0
  %953 = vmatpush1.bf16.msra.mxu0 0
  %954 = vmatprep.subr.bf16.mxu0 0
  %955 = vmatpush1.bf16.msra.mxu0 0
  %956 = vmatprep.subr.bf16.mxu0 0
  %957 = vmatpush1.bf16.msra.mxu0 0
  %958 = vmatprep.subr.bf16.mxu0 0
  %959 = vmatpush1.bf16.msra.mxu0 0
  %960 = vmatprep.subr.bf16.mxu0 0
  %961 = vmatpush1.bf16.msra.mxu0 0
  %962 = vmatprep.subr.bf16.mxu0 0
  %963 = vmatpush1.bf16.msra.mxu0 0
  %964 = vmatprep.subr.bf16.mxu0 0
  %965 = vmatpush1.bf16.msra.mxu0 0
  %966 = vmatprep.subr.bf16.mxu0 0
  %967 = vmatpush1.bf16.msra.mxu0 0
  %968 = vmatprep.subr.bf16.mxu0 0
  %969 = vmatpush1.bf16.msra.mxu0 0
  %970 = vmatprep.subr.bf16.mxu0 0
  %971 = vmatpush1.bf16.msra.mxu0 0
  %972 = vmatprep.subr.bf16.mxu0 0
  %973 = vmatpush1.bf16.msra.mxu0 0
  %974 = vmatprep.subr.bf16.mxu0 0
  %975 = vmatpush1.bf16.msra.mxu0 0
  %976 = vmatprep.subr.bf16.mxu0 0
  %977 = vmatpush1.bf16.msra.mxu0 0
  %978 = vmatprep.subr.bf16.mxu0 0
  %979 = vmatpush1.bf16.msra.mxu0 0
  %980 = vmatprep.mubr.bf16.mxu0 0
  %981 = vmatmul.mubr.bf16.gmra.mrb[0].mxu0 %v946
  %v982 = vpop.f32.mrb[0].mxu0
  %v983 = vadd.f32 0.0, %v982
  %v984 = vpop.f32.mrb[0].mxu0
  %v985 = vpop.f32.mrb[0].mxu0
  %v986 = vadd.f32 0.0, %v985
  %v987 = vpop.f32.mrb[0].mxu0
  %988 = vdwg.mxu0
  %991 = vrot.lane.b32.xlu0 %v983, 16
  %v992 = vpop.permute.xlu0 %991
  %993 = vrot.lane.b32.xlu0 %v986, 16
  %v994 = vpop.permute.xlu0 %993
  %v997 = vsel %vm144, %v862, %v992
  %v998 = vsel %vm144, %v865, %v994
  %v999 = vpack.c.bf16 %v998, %v997
  %v1000 = vlaneseq
  %v1001 = vshrl.u32 %v1000, 7
  %v1002 = vsub.s32 1, %v1001
  %v1003 = vrot.slane %v685, %v1002
  %1004 = vrot.lane.b32.xlu0 %v699, 32
  %v1005 = vpop.permute.xlu0 %1004
  %1006 = vrot.lane.b32.xlu0 %v700, 32
  %v1007 = vpop.permute.xlu0 %1006
  %v1011 = vsel %vm28, %v999, 0
  %1013 = vmatprep.subr.bf16.mxu0 0
  %1014 = vmatpush1.bf16.msra.mxu0 %v1005
  %1015 = vmatprep.subr.bf16.mxu0 0
  %1016 = vmatpush1.bf16.msra.mxu0 %v1007
  %1017 = vmatprep.subr.bf16.mxu0 0
  %1018 = vmatpush1.bf16.msra.mxu0 0
  %1019 = vmatprep.subr.bf16.mxu0 0
  %1020 = vmatpush1.bf16.msra.mxu0 0
  %1021 = vmatprep.subr.bf16.mxu0 0
  %1022 = vmatpush1.bf16.msra.mxu0 0
  %1023 = vmatprep.subr.bf16.mxu0 0
  %1024 = vmatpush1.bf16.msra.mxu0 0
  %1025 = vmatprep.subr.bf16.mxu0 0
  %1026 = vmatpush1.bf16.msra.mxu0 0
  %1027 = vmatprep.subr.bf16.mxu0 0
  %1028 = vmatpush1.bf16.msra.mxu0 0
  %1029 = vmatprep.subr.bf16.mxu0 0
  %1030 = vmatpush1.bf16.msra.mxu0 0
  %1031 = vmatprep.subr.bf16.mxu0 0
  %1032 = vmatpush1.bf16.msra.mxu0 0
  %1033 = vmatprep.subr.bf16.mxu0 0
  %1034 = vmatpush1.bf16.msra.mxu0 0
  %1035 = vmatprep.subr.bf16.mxu0 0
  %1036 = vmatpush1.bf16.msra.mxu0 0
  %1037 = vmatprep.subr.bf16.mxu0 0
  %1038 = vmatpush1.bf16.msra.mxu0 0
  %1039 = vmatprep.subr.bf16.mxu0 0
  %1040 = vmatpush1.bf16.msra.mxu0 0
  %1041 = vmatprep.subr.bf16.mxu0 0
  %1042 = vmatpush1.bf16.msra.mxu0 0
  %1043 = vmatprep.subr.bf16.mxu0 0
  %1044 = vmatpush1.bf16.msra.mxu0 0
  %1045 = vmatprep.mubr.bf16.mxu0 0
  %1046 = vmatmul.mubr.bf16.gmra.mrb[0].mxu0 %v1011
  %v1047 = vpop.f32.mrb[0].mxu0
  %v1048 = vadd.f32 %v1003, %v1047
  %v1049 = vpop.f32.mrb[0].mxu0
  %v1050 = vpop.f32.mrb[0].mxu0
  %v1051 = vadd.f32 %v1003, %v1050
  %v1052 = vpop.f32.mrb[0].mxu0
  %1053 = vdwg.mxu0
  %v1054 = vadd.f32 %v673, %v1048
  %v1055 = vadd.f32 %v674, %v1051
  %v1056 = vsel %vm28, %v1054, 0.0
  %1057 = vadd.xlane.f32.xlu0 %v1056
  %v1058 = vpop.xlane.xlu0 %1057
  %v1059 = vsel %vm28, %v1055, 0.0
  %1060 = vadd.xlane.f32.xlu0 %v1059
  %v1061 = vpop.xlane.xlu0 %1060
  %v1062 = vmul.f32 %v1058, %v35
  %v1063 = vmul.f32 %v1061, %v35
  %v1064 = vsub.f32 %v1054, %v1062
  %v1065 = vsub.f32 %v1055, %v1063
  %v1066 = vmul.f32 %v1064, %v1064
  %v1067 = vmul.f32 %v1065, %v1065
  %v1068 = vsel %vm28, %v1066, 0.0
  %1069 = vadd.xlane.f32.xlu0 %v1068
  %v1070 = vpop.xlane.xlu0 %1069
  %v1071 = vsel %vm28, %v1067, 0.0
  %1072 = vadd.xlane.f32.xlu0 %v1071
  %v1073 = vpop.xlane.xlu0 %1072
  %v1074 = vmul.f32 %v1070, %v35
  %v1075 = vmul.f32 %v1073, %v35
  %v1076 = vadd.f32 %v1074, 1e-12
  %v1077 = vadd.f32 %v1075, 1e-12
  %v1078 = vrsqrt.pop %v1076
  %v1079 = vrsqrt.pop %v1077
  %v1080 = vmul.f32 %v1064, %v1078
  %v1081 = vmul.f32 %v1065, %v1079
  %v1082 = vlaneseq
  %v1083 = vshrl.u32 %v1082, 7
  %v1084 = vsub.s32 2, %v1083
  %v1085 = vrot.slane %v685, %v1084
  %v1086 = vmul.f32 %v1080, %v1085
  %v1087 = vmul.f32 %v1081, %v1085
  %v1088 = vlaneseq
  %v1089 = vshrl.u32 %v1088, 7
  %v1090 = vsub.s32 3, %v1089
  %v1091 = vrot.slane %v685, %v1090
  %v1092 = vadd.f32 %v1086, %v1091
  %v1093 = vadd.f32 %v1087, %v1091
  %v1094 = vpack.c.bf16 %v1093, %v1092
  %v1095 = vlaneseq
  %v1096 = vshrl.u32 %v1095, 7
  %v1097 = vsub.s32 4, %v1096
  %v1098 = vrot.slane %v685, %v1097
  %v1099 = vunpack.c.h.b16 %v676
  %v1100 = vunpack.c.h.b16 %v677
  %v1101 = vunpack.c.h.b16 %v678
  %v1102 = vunpack.c.h.b16 %v679
  %v1103 = vpack.c.b16 %v1100, %v1099
  %v1104 = vpack.c.b16 %v1102, %v1101
  %v1108 = vsel %vm28, %v1094, 0
  %1110 = vmatprep.subr.bf16.mxu0 0
  %1111 = vmatpush1.bf16.msra.mxu0 %v1103
  %1112 = vmatprep.subr.bf16.mxu0 0
  %1113 = vmatpush1.bf16.msra.mxu0 %v1104
  %1114 = vmatprep.subr.bf16.mxu0 0
  %1115 = vmatpush1.bf16.msra.mxu0 0
  %1116 = vmatprep.subr.bf16.mxu0 0
  %1117 = vmatpush1.bf16.msra.mxu0 0
  %1118 = vmatprep.subr.bf16.mxu0 0
  %1119 = vmatpush1.bf16.msra.mxu0 0
  %1120 = vmatprep.subr.bf16.mxu0 0
  %1121 = vmatpush1.bf16.msra.mxu0 0
  %1122 = vmatprep.subr.bf16.mxu0 0
  %1123 = vmatpush1.bf16.msra.mxu0 0
  %1124 = vmatprep.subr.bf16.mxu0 0
  %1125 = vmatpush1.bf16.msra.mxu0 0
  %1126 = vmatprep.subr.bf16.mxu0 0
  %1127 = vmatpush1.bf16.msra.mxu0 0
  %1128 = vmatprep.subr.bf16.mxu0 0
  %1129 = vmatpush1.bf16.msra.mxu0 0
  %1130 = vmatprep.subr.bf16.mxu0 0
  %1131 = vmatpush1.bf16.msra.mxu0 0
  %1132 = vmatprep.subr.bf16.mxu0 0
  %1133 = vmatpush1.bf16.msra.mxu0 0
  %1134 = vmatprep.subr.bf16.mxu0 0
  %1135 = vmatpush1.bf16.msra.mxu0 0
  %1136 = vmatprep.subr.bf16.mxu0 0
  %1137 = vmatpush1.bf16.msra.mxu0 0
  %1138 = vmatprep.subr.bf16.mxu0 0
  %1139 = vmatpush1.bf16.msra.mxu0 0
  %1140 = vmatprep.subr.bf16.mxu0 0
  %1141 = vmatpush1.bf16.msra.mxu0 0
  %1142 = vmatprep.mubr.bf16.mxu0 0
  %1143 = vmatmul.mubr.bf16.gmra.mrb[0].mxu0 %v1108
  %v1144 = vpop.f32.mrb[0].mxu0
  %v1145 = vadd.f32 %v1098, %v1144
  %v1146 = vpop.f32.mrb[0].mxu0
  %v1147 = vpop.f32.mrb[0].mxu0
  %v1148 = vadd.f32 %v1098, %v1147
  %v1149 = vpop.f32.mrb[0].mxu0
  %1150 = vdwg.mxu0
  %v1151 = vmul.f32 %v1145, 0.5
  %v1152 = vmul.f32 %v1148, 0.5
  %v1153 = vmul.f32 %v1145, 0.044715
  %v1154 = vmul.f32 %v1148, 0.044715
  %v1155 = vmul.f32 %v1153, %v1145
  %v1156 = vmul.f32 %v1154, %v1148
  %v1157 = vmul.f32 %v1155, %v1145
  %v1158 = vmul.f32 %v1156, %v1148
  %v1159 = vadd.f32 %v1145, %v1157
  %v1160 = vadd.f32 %v1148, %v1158
  %v1161 = vmul.f32 %v1159, 0.7978846
  %v1162 = vmul.f32 %v1160, 0.7978846
  %v1163 = vtanh.pop %v1161
  %v1164 = vtanh.pop %v1162
  %v1165 = vadd.f32 %v1163, 1.0
  %v1166 = vadd.f32 %v1164, 1.0
  %v1167 = vmul.f32 %v1151, %v1165
  %v1168 = vmul.f32 %v1152, %v1166
  %v1169 = vpack.c.bf16 %v1168, %v1167
  %v1170 = vlaneseq
  %v1171 = vshrl.u32 %v1170, 7
  %v1172 = vsub.s32 5, %v1171
  %v1173 = vrot.slane %v685, %v1172
  %v1178 = vunpack.c.h.b16 %v680
  %v1179 = vunpack.c.h.b16 %v681
  %v1180 = vunpack.c.h.b16 %v682
  %v1181 = vunpack.c.h.b16 %v683
  %v1182 = vpack.c.b16 %v1179, %v1178
  %v1183 = vpack.c.b16 %v1181, %v1180
  %1184 = vrot.lane.b32.xlu0 %v1103, 64
  %v1185 = vpop.permute.xlu0 %1184
  %1186 = vrot.lane.b32.xlu0 %v1104, 64
  %v1187 = vpop.permute.xlu0 %1186
  %1188 = vrot.lane.b32.xlu0 %v1182, 64
  %v1189 = vpop.permute.xlu0 %1188
  %1190 = vrot.lane.b32.xlu0 %v1183, 64
  %v1191 = vpop.permute.xlu0 %1190
  %v1197 = vsel %vm590, %v1169, 0
  %1199 = vmatprep.subr.bf16.mxu0 0
  %1200 = vmatpush1.bf16.msra.mxu0 %v1185
  %1201 = vmatprep.subr.bf16.mxu0 0
  %1202 = vmatpush1.bf16.msra.mxu0 %v1187
  %1203 = vmatprep.subr.bf16.mxu0 0
  %1204 = vmatpush1.bf16.msra.mxu0 %v1189
  %1205 = vmatprep.subr.bf16.mxu0 0
  %1206 = vmatpush1.bf16.msra.mxu0 %v1191
  %1207 = vmatprep.subr.bf16.mxu0 0
  %1208 = vmatpush1.bf16.msra.mxu0 0
  %1209 = vmatprep.subr.bf16.mxu0 0
  %1210 = vmatpush1.bf16.msra.mxu0 0
  %1211 = vmatprep.subr.bf16.mxu0 0
  %1212 = vmatpush1.bf16.msra.mxu0 0
  %1213 = vmatprep.subr.bf16.mxu0 0
  %1214 = vmatpush1.bf16.msra.mxu0 0
  %1215 = vmatprep.subr.bf16.mxu0 0
  %1216 = vmatpush1.bf16.msra.mxu0 0
  %1217 = vmatprep.subr.bf16.mxu0 0
  %1218 = vmatpush1.bf16.msra.mxu0 0
  %1219 = vmatprep.subr.bf16.mxu0 0
  %1220 = vmatpush1.bf16.msra.mxu0 0
  %1221 = vmatprep.subr.bf16.mxu0 0
  %1222 = vmatpush1.bf16.msra.mxu0 0
  %1223 = vmatprep.subr.bf16.mxu0 0
  %1224 = vmatpush1.bf16.msra.mxu0 0
  %1225 = vmatprep.subr.bf16.mxu0 0
  %1226 = vmatpush1.bf16.msra.mxu0 0
  %1227 = vmatprep.subr.bf16.mxu0 0
  %1228 = vmatpush1.bf16.msra.mxu0 0
  %1229 = vmatprep.subr.bf16.mxu0 0
  %1230 = vmatpush1.bf16.msra.mxu0 0
  %1231 = vmatprep.mubr.bf16.mxu0 0
  %1232 = vmatmul.mubr.bf16.gmra.mrb[0].mxu0 %v1197
  %v1233 = vpop.f32.mrb[0].mxu0
  %v1234 = vadd.f32 %v1173, %v1233
  %v1235 = vpop.f32.mrb[0].mxu0
  %v1236 = vpop.f32.mrb[0].mxu0
  %v1237 = vadd.f32 %v1173, %v1236
  %v1238 = vpop.f32.mrb[0].mxu0
  %1239 = vdwg.mxu0
  %v1240 = vadd.f32 %v1092, %v1234
  %v1241 = vadd.f32 %v1093, %v1237
  %v1242 = vsel %vm28, %v1240, 0.0
  %1243 = vadd.xlane.f32.xlu0 %v1242
  %v1244 = vpop.xlane.xlu0 %1243
  %v1245 = vsel %vm28, %v1241, 0.0
  %1246 = vadd.xlane.f32.xlu0 %v1245
  %v1247 = vpop.xlane.xlu0 %1246
  %v1248 = vmul.f32 %v1244, %v35
  %v1249 = vmul.f32 %v1247, %v35
  %v1250 = vsub.f32 %v1240, %v1248
  %v1251 = vsub.f32 %v1241, %v1249
  %v1252 = vmul.f32 %v1250, %v1250
  %v1253 = vmul.f32 %v1251, %v1251
  %v1254 = vsel %vm28, %v1252, 0.0
  %1255 = vadd.xlane.f32.xlu0 %v1254
  %v1256 = vpop.xlane.xlu0 %1255
  %v1257 = vsel %vm28, %v1253, 0.0
  %1258 = vadd.xlane.f32.xlu0 %v1257
  %v1259 = vpop.xlane.xlu0 %1258
  %v1260 = vmul.f32 %v1256, %v35
  %v1261 = vmul.f32 %v1259, %v35
  %v1262 = vadd.f32 %v1260, 1e-12
  %v1263 = vadd.f32 %v1261, 1e-12
  %v1264 = vrsqrt.pop %v1262
  %v1265 = vrsqrt.pop %v1263
  %v1266 = vmul.f32 %v1250, %v1264
  %v1267 = vmul.f32 %v1251, %v1265
  %v1268 = vlaneseq
  %v1269 = vshrl.u32 %v1268, 7
  %v1270 = vsub.s32 6, %v1269
  %v1271 = vrot.slane %v685, %v1270
  %v1272 = vmul.f32 %v1266, %v1271
  %v1273 = vmul.f32 %v1267, %v1271
  %v1274 = vlaneseq
  %v1275 = vshrl.u32 %v1274, 7
  %v1276 = vsub.s32 7, %v1275
  %v1277 = vrot.slane %v685, %v1276
  %v1278 = vadd.f32 %v1272, %v1277
  %v1279 = vadd.f32 %v1273, %v1277
  %v1280 = vpack.c.bf16 %v1279, %v1278
  %v1281 = vld [vmem:[%s5] sm:$0xf]
  %v1282 = vld [vmem:[%s5 + $0x4] sm:$0xf]
  %v1283 = vld [vmem:[%s5 + $0x8] sm:$0xf]
  %v1284 = vld [vmem:[%s5 + $0xc] sm:$0xf]
  %v1285 = vld [vmem:[%s4 + $0x2] sm:$0x1]
  %v1286 = vlaneseq
  %v1287 = vshrl.u32 %v1286, 7
  %v1288 = vsub.s32 0, %v1287
  %v1289 = vrot.slane %v1285, %v1288
  %v1294 = vunpack.c.l.b16 %v1281
  %v1295 = vunpack.c.l.b16 %v1282
  %v1296 = vunpack.c.l.b16 %v1283
  %v1297 = vunpack.c.l.b16 %v1284
  %v1298 = vpack.c.b16 %v1295, %v1294
  %v1299 = vpack.c.b16 %v1297, %v1296
  %v1303 = vsel %vm28, %v1280, 0
  %1305 = vmatprep.subr.bf16.mxu0 0
  %1306 = vmatpush1.bf16.msra.mxu0 %v1298
  %1307 = vmatprep.subr.bf16.mxu0 0
  %1308 = vmatpush1.bf16.msra.mxu0 %v1299
  %1309 = vmatprep.subr.bf16.mxu0 0
  %1310 = vmatpush1.bf16.msra.mxu0 0
  %1311 = vmatprep.subr.bf16.mxu0 0
  %1312 = vmatpush1.bf16.msra.mxu0 0
  %1313 = vmatprep.subr.bf16.mxu0 0
  %1314 = vmatpush1.bf16.msra.mxu0 0
  %1315 = vmatprep.subr.bf16.mxu0 0
  %1316 = vmatpush1.bf16.msra.mxu0 0
  %1317 = vmatprep.subr.bf16.mxu0 0
  %1318 = vmatpush1.bf16.msra.mxu0 0
  %1319 = vmatprep.subr.bf16.mxu0 0
  %1320 = vmatpush1.bf16.msra.mxu0 0
  %1321 = vmatprep.subr.bf16.mxu0 0
  %1322 = vmatpush1.bf16.msra.mxu0 0
  %1323 = vmatprep.subr.bf16.mxu0 0
  %1324 = vmatpush1.bf16.msra.mxu0 0
  %1325 = vmatprep.subr.bf16.mxu0 0
  %1326 = vmatpush1.bf16.msra.mxu0 0
  %1327 = vmatprep.subr.bf16.mxu0 0
  %1328 = vmatpush1.bf16.msra.mxu0 0
  %1329 = vmatprep.subr.bf16.mxu0 0
  %1330 = vmatpush1.bf16.msra.mxu0 0
  %1331 = vmatprep.subr.bf16.mxu0 0
  %1332 = vmatpush1.bf16.msra.mxu0 0
  %1333 = vmatprep.subr.bf16.mxu0 0
  %1334 = vmatpush1.bf16.msra.mxu0 0
  %1335 = vmatprep.subr.bf16.mxu0 0
  %1336 = vmatpush1.bf16.msra.mxu0 0
  %1337 = vmatprep.mubr.bf16.mxu0 0
  %1338 = vmatmul.mubr.bf16.gmra.mrb[0].mxu0 %v1303
  %v1339 = vpop.f32.mrb[0].mxu0
  %v1340 = vadd.f32 %v1289, %v1339
  %v1341 = vpop.f32.mrb[0].mxu0
  %v1342 = vpop.f32.mrb[0].mxu0
  %v1343 = vadd.f32 %v1289, %v1342
  %v1344 = vpop.f32.mrb[0].mxu0
  %1345 = vdwg.mxu0
  %1346 = vst [vmem:[%s6] sm:$0xff] %v1340
  %1347 = vst [vmem:[%s6 + $0x8] sm:$0xff] %v1343
  // Predicated region
  $region26: #{bert_classifier_forward.1} parent=0 // pred_check
    _
  $region27: #{bert_classifier_forward.1} parent=0 // pred_check_branch
    %1349 = sbr.rel (0) target = $region29
  $region28: #{bert_classifier_forward.1} parent=0 // pred_region
    _
  $region29: #{bert_classifier_forward.1} parent=0 // pred_fallthru
    _
  // Predicated region
  $region30: #{bert_classifier_forward.1} parent=0 // pred_check
    _
  $region31: #{bert_classifier_forward.1} parent=0 // pred_check_branch
    %1351 = sbr.rel (0) target = $region33
  $region32: #{bert_classifier_forward.1} parent=0 // pred_region
    _
  $region33: #{bert_classifier_forward.1} parent=0 // pred_fallthru
    _

</llo_original>
